<compile_context>
chip_gen: v7x
topology: tpu7x:2x2x1
jax: 0.10.0
libtpu: 0.0.40
codegen_flags: <defaults>
</compile_context>

<pallas_src>
import math

import jax
import jax.numpy as jnp
from jax import lax
from jax.experimental import pallas as pl
from jax.experimental.pallas import tpu as pltpu  # noqa: F401  (TPU backend assumed)

# ---------------- config (small, synthetic) ----------------
HIDDEN = 32
NUM_HEADS = 4
HEAD_DIM = HIDDEN // NUM_HEADS
INTERMEDIATE = 64
EPS = 1e-12
B = 2
L1 = 8   # s1 (query) sequence length
L2 = 8   # s2 (key/value) sequence length

NEG_BIG = -30000.0                      # cross-batch additive mask

# ---- packed parameter slab layout: one (PACK_ROWS, 128) f32 array ----
PACK_W = 128
R_WQKV = 0                              # rows [0,   32)  cols [0, 96)  : [Wq|Wk|Wv]
R_WSO = HIDDEN                          # rows [32,  64)  cols [0, 32)  : self-output dense
R_WI = 2 * HIDDEN                       # rows [64,  96)  cols [0, 64)  : intermediate dense
R_WO = 3 * HIDDEN                       # rows [96, 160)  cols [0, 32)  : output dense
R_VEC = 3 * HIDDEN + INTERMEDIATE       # rows [160,168)  bias / gamma / beta table
PACK_ROWS = R_VEC + 8


# ---------------- fused kernel ----------------
def _layernorm(x, g, b):
    mu = jnp.mean(x, axis=-1, keepdims=True)
    var = jnp.mean((x - mu) ** 2, axis=-1, keepdims=True)
    return (x - mu) * lax.rsqrt(var + EPS) * g + b


def fused_layer_kernel(x1_ref, x2_ref, mask_ref, p_ref, out_ref):
    """Whole BertCrossAttentionLayer for the flattened batch in one invocation.

    x1_ref : (B*L1, H)          flattened s1 hidden states (queries + residual)
    x2_ref : (B*L2, H)          flattened s2 hidden states (keys/values)
    mask_ref: (B*L1, B*L2)      additive mask (BERT mask + cross-batch blocking)
    p_ref  : (PACK_ROWS, 128)   packed parameter slab (see layout constants)
    """
    x1 = x1_ref[...]
    x2 = x2_ref[...]
    mask = mask_ref[...]

    # static, sublane-aligned views into the packed parameter slab (free)
    w_q = p_ref[R_WQKV:R_WQKV + HIDDEN, 0:HIDDEN]
    w_kv = p_ref[R_WQKV:R_WQKV + HIDDEN, HIDDEN:3 * HIDDEN]
    w_so = p_ref[R_WSO:R_WSO + HIDDEN, 0:HIDDEN]
    w_i = p_ref[R_WI:R_WI + HIDDEN, 0:INTERMEDIATE]
    w_o = p_ref[R_WO:R_WO + INTERMEDIATE, 0:HIDDEN]

    b_q = p_ref[R_VEC + 0:R_VEC + 1, 0:HIDDEN]
    b_kv = p_ref[R_VEC + 0:R_VEC + 1, HIDDEN:3 * HIDDEN]
    b_i = p_ref[R_VEC + 1:R_VEC + 2, 0:INTERMEDIATE]
    b_so = p_ref[R_VEC + 2:R_VEC + 3, 0:HIDDEN]
    g_so = p_ref[R_VEC + 3:R_VEC + 4, 0:HIDDEN]
    be_so = p_ref[R_VEC + 4:R_VEC + 5, 0:HIDDEN]
    b_o = p_ref[R_VEC + 5:R_VEC + 6, 0:HIDDEN]
    g_o = p_ref[R_VEC + 6:R_VEC + 7, 0:HIDDEN]
    be_o = p_ref[R_VEC + 7:R_VEC + 8, 0:HIDDEN]

    scale = 1.0 / math.sqrt(HEAD_DIM)

    # ---- projections: pre-scaled Q, fused K|V (2 dots instead of 3) ----
    q = (jnp.dot(x1, w_q, preferred_element_type=jnp.float32) + b_q) * scale
    kv = jnp.dot(x2, w_kv, preferred_element_type=jnp.float32) + b_kv
    k = kv[:, :HIDDEN]
    v = kv[:, HIDDEN:]

    # ---- multi-head cross attention, head-merge fused into the self-output dense ----
    attn_acc = jnp.zeros((x1.shape[0], HIDDEN), jnp.float32)
    for h in range(NUM_HEADS):                       # static unroll (NUM_HEADS=4)
        sl = slice(h * HEAD_DIM, (h + 1) * HEAD_DIM)
        qh, kh, vh = q[:, sl], k[:, sl], v[:, sl]    # (B*L, HEAD_DIM)

        # scores: contract last dims (MXU transposed-RHS path, no explicit K^T)
        s = lax.dot_general(qh, kh, (((1,), (1,)), ((), ())),
                            preferred_element_type=jnp.float32) + mask
        m = jnp.max(s, axis=-1, keepdims=True)
        e = jnp.exp(s - m)
        denom = jnp.sum(e, axis=-1, keepdims=True)
        inv = pl.reciprocal(denom, approx=True)       # EUP path
        inv = inv * (2.0 - denom * inv)               # 1 Newton step -> f32 accurate
        p = e * inv                                   # attention probs (dropout = identity)

        ctx_h = jnp.dot(p, vh, preferred_element_type=jnp.float32)   # (B*L1, HEAD_DIM)
        # fold "concat heads" into the self-output dense: acc += ctx_h @ Wso[head rows]
        attn_acc = attn_acc + jnp.dot(ctx_h, w_so[sl, :],
                                      preferred_element_type=jnp.float32)

    # ---- BertSelfOutput: dense (already in attn_acc) + bias + residual, LayerNorm ----
    hdn = attn_acc + b_so + x1
    attn_out = _layernorm(hdn, g_so, be_so)

    # ---- BertIntermediate (dense + exact GELU) + BertOutput (dense + residual + LN) ----
    inter = jnp.dot(attn_out, w_i, preferred_element_type=jnp.float32) + b_i
    inter = 0.5 * inter * (1.0 + lax.erf(inter * (1.0 / math.sqrt(2.0))))
    y = jnp.dot(inter, w_o, preferred_element_type=jnp.float32) + b_o + attn_out
    out = _layernorm(y, g_o, be_o)

    out_ref[...] = out.astype(out_ref.dtype)


# ---------------- wrapper (layout plumbing lives here, outside the kernel) ----------------
def _pack_params(p, Hn):
    """Pack every weight / bias / LN param into one (PACK_ROWS, 128) slab."""
    P = jnp.zeros((PACK_ROWS, PACK_W), jnp.float32)
    P = P.at[R_WQKV:R_WQKV + Hn, 0:3 * Hn].set(
        jnp.concatenate([p["qw"], p["kw"], p["vw"]], axis=1))
    P = P.at[R_WSO:R_WSO + Hn, 0:Hn].set(p["so_w"])
    P = P.at[R_WI:R_WI + Hn, 0:INTERMEDIATE].set(p["i_w"])
    P = P.at[R_WO:R_WO + INTERMEDIATE, 0:Hn].set(p["o_w"])
    P = P.at[R_VEC + 0, 0:3 * Hn].set(jnp.concatenate([p["qb"], p["kb"], p["vb"]]))
    P = P.at[R_VEC + 1, 0:INTERMEDIATE].set(p["i_b"])
    P = P.at[R_VEC + 2, 0:Hn].set(p["so_b"])
    P = P.at[R_VEC + 3, 0:Hn].set(p["so_g"])
    P = P.at[R_VEC + 4, 0:Hn].set(p["so_be"])
    P = P.at[R_VEC + 5, 0:Hn].set(p["o_b"])
    P = P.at[R_VEC + 6, 0:Hn].set(p["o_g"])
    P = P.at[R_VEC + 7, 0:Hn].set(p["o_be"])
    return P


@jax.jit
def bert_cross_attention_layer(s1, s2, mask3, p):
    """s1: (B, L1, H), s2: (B, L2, H), mask3: (B, 1, L2) additive BERT mask."""
    Bn, L1n, Hn = s1.shape
    L2n = s2.shape[1]

    # flatten batch into sublanes
    x1 = s1.reshape(Bn * L1n, Hn)
    x2 = s2.reshape(Bn * L2n, Hn)

    # combined additive mask over the flattened batch: within-batch pairs get the
    # BERT key mask, cross-batch pairs get NEG_BIG (-> exactly zero probability).
    bq = jnp.repeat(jnp.arange(Bn, dtype=jnp.int32), L1n)
    bk = jnp.repeat(jnp.arange(Bn, dtype=jnp.int32), L2n)
    key_mask = mask3[:, 0, :].reshape(Bn * L2n).astype(jnp.float32)
    big_mask = jnp.where(bq[:, None] == bk[None, :],
                         key_mask[None, :],
                         jnp.float32(NEG_BIG)).astype(jnp.float32)

    packed = _pack_params(p, Hn)

    out_flat = pl.pallas_call(
        fused_layer_kernel,
        out_shape=jax.ShapeDtypeStruct((Bn * L1n, Hn), jnp.float32),
    )(x1, x2, big_mask, packed)

    return out_flat.reshape(Bn, L1n, Hn)


# ---------------- pure-JAX reference (sanity check) ----------------
def reference(s1, s2, mask3, p):
    Bn, L1n, Hn = s1.shape
    L2n = s2.shape[1]
    q = s1 @ p["qw"] + p["qb"]
    k = s2 @ p["kw"] + p["kb"]
    v = s2 @ p["vw"] + p["vb"]

    def heads(x, L):
        return x.reshape(Bn, L, NUM_HEADS, HEAD_DIM).transpose(0, 2, 1, 3)

    qh, kh, vh = heads(q, L1n), heads(k, L2n), heads(v, L2n)
    scores = jnp.einsum("bhqd,bhkd->bhqk", qh, kh) / math.sqrt(HEAD_DIM)
    scores = scores + mask3[:, None, :, :]
    probs = jax.nn.softmax(scores, axis=-1)
    ctx = jnp.einsum("bhqk,bhkd->bhqd", probs, vh).transpose(0, 2, 1, 3).reshape(Bn, L1n, Hn)

    def ln(x, g, b):
        mu = x.mean(-1, keepdims=True)
        var = ((x - mu) ** 2).mean(-1, keepdims=True)
        return (x - mu) * lax.rsqrt(var + EPS) * g + b

    attn_out = ln(ctx @ p["so_w"] + p["so_b"] + s1, p["so_g"], p["so_be"])
    inter = attn_out @ p["i_w"] + p["i_b"]
    inter = 0.5 * inter * (1.0 + lax.erf(inter / math.sqrt(2.0)))
    return ln(inter @ p["o_w"] + p["o_b"] + attn_out, p["o_g"], p["o_be"])


# ---------------- main ----------------
if __name__ == "__main__":
    key = jax.random.PRNGKey(0)
    ks = jax.random.split(key, 16)

    def w(k, shape):
        return (0.02 * jax.random.normal(k, shape)).astype(jnp.float32)

    params = {
        "qw": w(ks[0], (HIDDEN, HIDDEN)), "qb": w(ks[1], (HIDDEN,)),
        "kw": w(ks[2], (HIDDEN, HIDDEN)), "kb": w(ks[3], (HIDDEN,)),
        "vw": w(ks[4], (HIDDEN, HIDDEN)), "vb": w(ks[5], (HIDDEN,)),
        "so_w": w(ks[6], (HIDDEN, HIDDEN)), "so_b": w(ks[7], (HIDDEN,)),
        "so_g": jnp.ones((HIDDEN,), jnp.float32), "so_be": jnp.zeros((HIDDEN,), jnp.float32),
        "i_w": w(ks[8], (HIDDEN, INTERMEDIATE)), "i_b": w(ks[9], (INTERMEDIATE,)),
        "o_w": w(ks[10], (INTERMEDIATE, HIDDEN)), "o_b": w(ks[11], (HIDDEN,)),
        "o_g": jnp.ones((HIDDEN,), jnp.float32), "o_be": jnp.zeros((HIDDEN,), jnp.float32),
    }

    s1 = jax.random.normal(ks[12], (B, L1, HIDDEN), jnp.float32)
    s2 = jax.random.normal(ks[13], (B, L2, HIDDEN), jnp.float32)

    # standard BERT additive mask: 0 for valid, -10000 for masked; shape (B, 1, L2)
    valid = jnp.ones((B, L2), jnp.float32).at[1, L2 - 2:].set(0.0)
    mask3 = ((1.0 - valid) * -10000.0)[:, None, :]

    out = bert_cross_attention_layer(s1, s2, mask3, params)
    out = jax.block_until_ready(out)

    ref = reference(s1, s2, mask3, params)
    assert out.shape == (B, L1, HIDDEN)
    assert jnp.allclose(out, ref, atol=1e-4, rtol=1e-4), "mismatch vs pure-JAX reference"

    print("KERNEL_OK")
</pallas_src>

<mosaic_0001>
module attributes {stable_mosaic.version = 11 : i64} {
  func.func @fused_layer_kernel(%arg0: memref<16x32xf32, #tpu.memory_space<vmem>>, %arg1: memref<16x32xf32, #tpu.memory_space<vmem>>, %arg2: memref<16x16xf32, #tpu.memory_space<vmem>>, %arg3: memref<168x128xf32, #tpu.memory_space<vmem>>, %arg4: memref<16x32xf32, #tpu.memory_space<vmem>>) attributes {dimension_semantics = [], scalar_prefetch = 0 : i64, scratch_operands = 0 : i64, tpu.core_type = #tpu.core_type<tc>} {
    %c0 = arith.constant 0 : index
    %c0_0 = arith.constant 0 : index
    %0 = vector.load %arg0[%c0, %c0_0] : memref<16x32xf32, #tpu.memory_space<vmem>>, vector<16x32xf32>
    %c0_1 = arith.constant 0 : index
    %c0_2 = arith.constant 0 : index
    %1 = vector.load %arg1[%c0_1, %c0_2] : memref<16x32xf32, #tpu.memory_space<vmem>>, vector<16x32xf32>
    %c0_3 = arith.constant 0 : index
    %c0_4 = arith.constant 0 : index
    %2 = vector.load %arg2[%c0_3, %c0_4] : memref<16x16xf32, #tpu.memory_space<vmem>>, vector<16x16xf32>
    %c0_5 = arith.constant 0 : index
    %c0_6 = arith.constant 0 : index
    %3 = vector.load %arg3[%c0_5, %c0_6] : memref<168x128xf32, #tpu.memory_space<vmem>>, vector<32x32xf32>
    %c0_7 = arith.constant 0 : index
    %c32 = arith.constant 32 : index
    %4 = vector.load %arg3[%c0_7, %c32] : memref<168x128xf32, #tpu.memory_space<vmem>>, vector<32x64xf32>
    %c32_8 = arith.constant 32 : index
    %c0_9 = arith.constant 0 : index
    %5 = vector.load %arg3[%c32_8, %c0_9] : memref<168x128xf32, #tpu.memory_space<vmem>>, vector<32x32xf32>
    %c64 = arith.constant 64 : index
    %c0_10 = arith.constant 0 : index
    %6 = vector.load %arg3[%c64, %c0_10] : memref<168x128xf32, #tpu.memory_space<vmem>>, vector<32x64xf32>
    %c96 = arith.constant 96 : index
    %c0_11 = arith.constant 0 : index
    %7 = vector.load %arg3[%c96, %c0_11] : memref<168x128xf32, #tpu.memory_space<vmem>>, vector<64x32xf32>
    %c160 = arith.constant 160 : index
    %c0_12 = arith.constant 0 : index
    %8 = vector.load %arg3[%c160, %c0_12] : memref<168x128xf32, #tpu.memory_space<vmem>>, vector<1x32xf32>
    %c160_13 = arith.constant 160 : index
    %c32_14 = arith.constant 32 : index
    %9 = vector.load %arg3[%c160_13, %c32_14] : memref<168x128xf32, #tpu.memory_space<vmem>>, vector<1x64xf32>
    %c161 = arith.constant 161 : index
    %c0_15 = arith.constant 0 : index
    %10 = vector.load %arg3[%c161, %c0_15] : memref<168x128xf32, #tpu.memory_space<vmem>>, vector<1x64xf32>
    %c162 = arith.constant 162 : index
    %c0_16 = arith.constant 0 : index
    %11 = vector.load %arg3[%c162, %c0_16] : memref<168x128xf32, #tpu.memory_space<vmem>>, vector<1x32xf32>
    %c163 = arith.constant 163 : index
    %c0_17 = arith.constant 0 : index
    %12 = vector.load %arg3[%c163, %c0_17] : memref<168x128xf32, #tpu.memory_space<vmem>>, vector<1x32xf32>
    %c164 = arith.constant 164 : index
    %c0_18 = arith.constant 0 : index
    %13 = vector.load %arg3[%c164, %c0_18] : memref<168x128xf32, #tpu.memory_space<vmem>>, vector<1x32xf32>
    %c165 = arith.constant 165 : index
    %c0_19 = arith.constant 0 : index
    %14 = vector.load %arg3[%c165, %c0_19] : memref<168x128xf32, #tpu.memory_space<vmem>>, vector<1x32xf32>
    %c166 = arith.constant 166 : index
    %c0_20 = arith.constant 0 : index
    %15 = vector.load %arg3[%c166, %c0_20] : memref<168x128xf32, #tpu.memory_space<vmem>>, vector<1x32xf32>
    %c167 = arith.constant 167 : index
    %c0_21 = arith.constant 0 : index
    %16 = vector.load %arg3[%c167, %c0_21] : memref<168x128xf32, #tpu.memory_space<vmem>>, vector<1x32xf32>
    %cst = arith.constant dense<0.000000e+00> : vector<16x32xf32>
    %17 = tpu.matmul %0, %3, %cst {dimension_numbers = #tpu.dot_dimension_numbers<[1], [0], [0], [1], [0, 0, 1, 1], [], []>} : vector<16x32xf32>, vector<32x32xf32>, vector<16x32xf32> -> vector<16x32xf32>
    %18 = vector.broadcast %8 : vector<1x32xf32> to vector<16x32xf32>
    %19 = arith.addf %17, %18 : vector<16x32xf32>
    %cst_22 = arith.constant 0.353553385 : f32
    %20 = vector.broadcast %cst_22 : f32 to vector<16x32xf32>
    %21 = arith.mulf %19, %20 : vector<16x32xf32>
    %cst_23 = arith.constant dense<0.000000e+00> : vector<16x64xf32>
    %22 = tpu.matmul %1, %4, %cst_23 {dimension_numbers = #tpu.dot_dimension_numbers<[1], [0], [0], [1], [0, 0, 1, 1], [], []>} : vector<16x32xf32>, vector<32x64xf32>, vector<16x64xf32> -> vector<16x64xf32>
    %23 = vector.broadcast %9 : vector<1x64xf32> to vector<16x64xf32>
    %24 = arith.addf %22, %23 : vector<16x64xf32>
    %25 = vector.extract_strided_slice %24 {offsets = [0, 0], sizes = [16, 32], strides = [1, 1]} : vector<16x64xf32> to vector<16x32xf32>
    %26 = vector.extract_strided_slice %24 {offsets = [0, 32], sizes = [16, 32], strides = [1, 1]} : vector<16x64xf32> to vector<16x32xf32>
    %cst_24 = arith.constant 0.000000e+00 : f32
    %27 = vector.broadcast %cst_24 : f32 to vector<16x32xf32>
    %28 = vector.extract_strided_slice %21 {offsets = [0, 0], sizes = [16, 8], strides = [1, 1]} : vector<16x32xf32> to vector<16x8xf32>
    %29 = vector.extract_strided_slice %25 {offsets = [0, 0], sizes = [16, 8], strides = [1, 1]} : vector<16x32xf32> to vector<16x8xf32>
    %30 = vector.extract_strided_slice %26 {offsets = [0, 0], sizes = [16, 8], strides = [1, 1]} : vector<16x32xf32> to vector<16x8xf32>
    %cst_25 = arith.constant dense<0.000000e+00> : vector<16x16xf32>
    %31 = tpu.matmul %28, %29, %cst_25 {dimension_numbers = #tpu.dot_dimension_numbers<[1], [1], [0], [0], [0, 0, 1, 0], [], []>} : vector<16x8xf32>, vector<16x8xf32>, vector<16x16xf32> -> vector<16x16xf32>
    %32 = arith.addf %31, %2 : vector<16x16xf32>
    %cst_26 = arith.constant dense<0xFF800000> : vector<16xf32>
    %33 = vector.multi_reduction <maximumf>, %32, %cst_26 [1] : vector<16x16xf32> to vector<16xf32>
    %34 = vector.shape_cast %33 : vector<16xf32> to vector<16x1xf32>
    %35 = vector.broadcast %34 : vector<16x1xf32> to vector<16x16xf32>
    %36 = arith.subf %32, %35 : vector<16x16xf32>
    %37 = math.exp %36 : vector<16x16xf32>
    %cst_27 = arith.constant dense<0.000000e+00> : vector<16xf32>
    %38 = vector.multi_reduction <add>, %37, %cst_27 [1] : vector<16x16xf32> to vector<16xf32>
    %39 = vector.shape_cast %38 : vector<16xf32> to vector<16x1xf32>
    %40 = tpu.reciprocal %39 {approx = true} : vector<16x1xf32> -> vector<16x1xf32>
    %41 = arith.mulf %39, %40 : vector<16x1xf32>
    %cst_28 = arith.constant 2.000000e+00 : f32
    %42 = vector.broadcast %cst_28 : f32 to vector<16x1xf32>
    %43 = arith.subf %42, %41 : vector<16x1xf32>
    %44 = arith.mulf %40, %43 : vector<16x1xf32>
    %45 = vector.broadcast %44 : vector<16x1xf32> to vector<16x16xf32>
    %46 = arith.mulf %37, %45 : vector<16x16xf32>
    %cst_29 = arith.constant dense<0.000000e+00> : vector<16x8xf32>
    %47 = tpu.matmul %46, %30, %cst_29 {dimension_numbers = #tpu.dot_dimension_numbers<[1], [0], [0], [1], [0, 0, 1, 1], [], []>} : vector<16x16xf32>, vector<16x8xf32>, vector<16x8xf32> -> vector<16x8xf32>
    %48 = vector.extract_strided_slice %5 {offsets = [0, 0], sizes = [8, 32], strides = [1, 1]} : vector<32x32xf32> to vector<8x32xf32>
    %cst_30 = arith.constant dense<0.000000e+00> : vector<16x32xf32>
    %49 = tpu.matmul %47, %48, %cst_30 {dimension_numbers = #tpu.dot_dimension_numbers<[1], [0], [0], [1], [0, 0, 1, 1], [], []>} : vector<16x8xf32>, vector<8x32xf32>, vector<16x32xf32> -> vector<16x32xf32>
    %50 = arith.addf %27, %49 : vector<16x32xf32>
    %51 = vector.extract_strided_slice %21 {offsets = [0, 8], sizes = [16, 8], strides = [1, 1]} : vector<16x32xf32> to vector<16x8xf32>
    %52 = vector.extract_strided_slice %25 {offsets = [0, 8], sizes = [16, 8], strides = [1, 1]} : vector<16x32xf32> to vector<16x8xf32>
    %53 = vector.extract_strided_slice %26 {offsets = [0, 8], sizes = [16, 8], strides = [1, 1]} : vector<16x32xf32> to vector<16x8xf32>
    %cst_31 = arith.constant dense<0.000000e+00> : vector<16x16xf32>
    %54 = tpu.matmul %51, %52, %cst_31 {dimension_numbers = #tpu.dot_dimension_numbers<[1], [1], [0], [0], [0, 0, 1, 0], [], []>} : vector<16x8xf32>, vector<16x8xf32>, vector<16x16xf32> -> vector<16x16xf32>
    %55 = arith.addf %54, %2 : vector<16x16xf32>
    %cst_32 = arith.constant dense<0xFF800000> : vector<16xf32>
    %56 = vector.multi_reduction <maximumf>, %55, %cst_32 [1] : vector<16x16xf32> to vector<16xf32>
    %57 = vector.shape_cast %56 : vector<16xf32> to vector<16x1xf32>
    %58 = vector.broadcast %57 : vector<16x1xf32> to vector<16x16xf32>
    %59 = arith.subf %55, %58 : vector<16x16xf32>
    %60 = math.exp %59 : vector<16x16xf32>
    %cst_33 = arith.constant dense<0.000000e+00> : vector<16xf32>
    %61 = vector.multi_reduction <add>, %60, %cst_33 [1] : vector<16x16xf32> to vector<16xf32>
    %62 = vector.shape_cast %61 : vector<16xf32> to vector<16x1xf32>
    %63 = tpu.reciprocal %62 {approx = true} : vector<16x1xf32> -> vector<16x1xf32>
    %64 = arith.mulf %62, %63 : vector<16x1xf32>
    %cst_34 = arith.constant 2.000000e+00 : f32
    %65 = vector.broadcast %cst_34 : f32 to vector<16x1xf32>
    %66 = arith.subf %65, %64 : vector<16x1xf32>
    %67 = arith.mulf %63, %66 : vector<16x1xf32>
    %68 = vector.broadcast %67 : vector<16x1xf32> to vector<16x16xf32>
    %69 = arith.mulf %60, %68 : vector<16x16xf32>
    %cst_35 = arith.constant dense<0.000000e+00> : vector<16x8xf32>
    %70 = tpu.matmul %69, %53, %cst_35 {dimension_numbers = #tpu.dot_dimension_numbers<[1], [0], [0], [1], [0, 0, 1, 1], [], []>} : vector<16x16xf32>, vector<16x8xf32>, vector<16x8xf32> -> vector<16x8xf32>
    %71 = vector.extract_strided_slice %5 {offsets = [8, 0], sizes = [8, 32], strides = [1, 1]} : vector<32x32xf32> to vector<8x32xf32>
    %cst_36 = arith.constant dense<0.000000e+00> : vector<16x32xf32>
    %72 = tpu.matmul %70, %71, %cst_36 {dimension_numbers = #tpu.dot_dimension_numbers<[1], [0], [0], [1], [0, 0, 1, 1], [], []>} : vector<16x8xf32>, vector<8x32xf32>, vector<16x32xf32> -> vector<16x32xf32>
    %73 = arith.addf %50, %72 : vector<16x32xf32>
    %74 = vector.extract_strided_slice %21 {offsets = [0, 16], sizes = [16, 8], strides = [1, 1]} : vector<16x32xf32> to vector<16x8xf32>
    %75 = vector.extract_strided_slice %25 {offsets = [0, 16], sizes = [16, 8], strides = [1, 1]} : vector<16x32xf32> to vector<16x8xf32>
    %76 = vector.extract_strided_slice %26 {offsets = [0, 16], sizes = [16, 8], strides = [1, 1]} : vector<16x32xf32> to vector<16x8xf32>
    %cst_37 = arith.constant dense<0.000000e+00> : vector<16x16xf32>
    %77 = tpu.matmul %74, %75, %cst_37 {dimension_numbers = #tpu.dot_dimension_numbers<[1], [1], [0], [0], [0, 0, 1, 0], [], []>} : vector<16x8xf32>, vector<16x8xf32>, vector<16x16xf32> -> vector<16x16xf32>
    %78 = arith.addf %77, %2 : vector<16x16xf32>
    %cst_38 = arith.constant dense<0xFF800000> : vector<16xf32>
    %79 = vector.multi_reduction <maximumf>, %78, %cst_38 [1] : vector<16x16xf32> to vector<16xf32>
    %80 = vector.shape_cast %79 : vector<16xf32> to vector<16x1xf32>
    %81 = vector.broadcast %80 : vector<16x1xf32> to vector<16x16xf32>
    %82 = arith.subf %78, %81 : vector<16x16xf32>
    %83 = math.exp %82 : vector<16x16xf32>
    %cst_39 = arith.constant dense<0.000000e+00> : vector<16xf32>
    %84 = vector.multi_reduction <add>, %83, %cst_39 [1] : vector<16x16xf32> to vector<16xf32>
    %85 = vector.shape_cast %84 : vector<16xf32> to vector<16x1xf32>
    %86 = tpu.reciprocal %85 {approx = true} : vector<16x1xf32> -> vector<16x1xf32>
    %87 = arith.mulf %85, %86 : vector<16x1xf32>
    %cst_40 = arith.constant 2.000000e+00 : f32
    %88 = vector.broadcast %cst_40 : f32 to vector<16x1xf32>
    %89 = arith.subf %88, %87 : vector<16x1xf32>
    %90 = arith.mulf %86, %89 : vector<16x1xf32>
    %91 = vector.broadcast %90 : vector<16x1xf32> to vector<16x16xf32>
    %92 = arith.mulf %83, %91 : vector<16x16xf32>
    %cst_41 = arith.constant dense<0.000000e+00> : vector<16x8xf32>
    %93 = tpu.matmul %92, %76, %cst_41 {dimension_numbers = #tpu.dot_dimension_numbers<[1], [0], [0], [1], [0, 0, 1, 1], [], []>} : vector<16x16xf32>, vector<16x8xf32>, vector<16x8xf32> -> vector<16x8xf32>
    %94 = vector.extract_strided_slice %5 {offsets = [16, 0], sizes = [8, 32], strides = [1, 1]} : vector<32x32xf32> to vector<8x32xf32>
    %cst_42 = arith.constant dense<0.000000e+00> : vector<16x32xf32>
    %95 = tpu.matmul %93, %94, %cst_42 {dimension_numbers = #tpu.dot_dimension_numbers<[1], [0], [0], [1], [0, 0, 1, 1], [], []>} : vector<16x8xf32>, vector<8x32xf32>, vector<16x32xf32> -> vector<16x32xf32>
    %96 = arith.addf %73, %95 : vector<16x32xf32>
    %97 = vector.extract_strided_slice %21 {offsets = [0, 24], sizes = [16, 8], strides = [1, 1]} : vector<16x32xf32> to vector<16x8xf32>
    %98 = vector.extract_strided_slice %25 {offsets = [0, 24], sizes = [16, 8], strides = [1, 1]} : vector<16x32xf32> to vector<16x8xf32>
    %99 = vector.extract_strided_slice %26 {offsets = [0, 24], sizes = [16, 8], strides = [1, 1]} : vector<16x32xf32> to vector<16x8xf32>
    %cst_43 = arith.constant dense<0.000000e+00> : vector<16x16xf32>
    %100 = tpu.matmul %97, %98, %cst_43 {dimension_numbers = #tpu.dot_dimension_numbers<[1], [1], [0], [0], [0, 0, 1, 0], [], []>} : vector<16x8xf32>, vector<16x8xf32>, vector<16x16xf32> -> vector<16x16xf32>
    %101 = arith.addf %100, %2 : vector<16x16xf32>
    %cst_44 = arith.constant dense<0xFF800000> : vector<16xf32>
    %102 = vector.multi_reduction <maximumf>, %101, %cst_44 [1] : vector<16x16xf32> to vector<16xf32>
    %103 = vector.shape_cast %102 : vector<16xf32> to vector<16x1xf32>
    %104 = vector.broadcast %103 : vector<16x1xf32> to vector<16x16xf32>
    %105 = arith.subf %101, %104 : vector<16x16xf32>
    %106 = math.exp %105 : vector<16x16xf32>
    %cst_45 = arith.constant dense<0.000000e+00> : vector<16xf32>
    %107 = vector.multi_reduction <add>, %106, %cst_45 [1] : vector<16x16xf32> to vector<16xf32>
    %108 = vector.shape_cast %107 : vector<16xf32> to vector<16x1xf32>
    %109 = tpu.reciprocal %108 {approx = true} : vector<16x1xf32> -> vector<16x1xf32>
    %110 = arith.mulf %108, %109 : vector<16x1xf32>
    %cst_46 = arith.constant 2.000000e+00 : f32
    %111 = vector.broadcast %cst_46 : f32 to vector<16x1xf32>
    %112 = arith.subf %111, %110 : vector<16x1xf32>
    %113 = arith.mulf %109, %112 : vector<16x1xf32>
    %114 = vector.broadcast %113 : vector<16x1xf32> to vector<16x16xf32>
    %115 = arith.mulf %106, %114 : vector<16x16xf32>
    %cst_47 = arith.constant dense<0.000000e+00> : vector<16x8xf32>
    %116 = tpu.matmul %115, %99, %cst_47 {dimension_numbers = #tpu.dot_dimension_numbers<[1], [0], [0], [1], [0, 0, 1, 1], [], []>} : vector<16x16xf32>, vector<16x8xf32>, vector<16x8xf32> -> vector<16x8xf32>
    %117 = vector.extract_strided_slice %5 {offsets = [24, 0], sizes = [8, 32], strides = [1, 1]} : vector<32x32xf32> to vector<8x32xf32>
    %cst_48 = arith.constant dense<0.000000e+00> : vector<16x32xf32>
    %118 = tpu.matmul %116, %117, %cst_48 {dimension_numbers = #tpu.dot_dimension_numbers<[1], [0], [0], [1], [0, 0, 1, 1], [], []>} : vector<16x8xf32>, vector<8x32xf32>, vector<16x32xf32> -> vector<16x32xf32>
    %119 = arith.addf %96, %118 : vector<16x32xf32>
    %120 = vector.broadcast %11 : vector<1x32xf32> to vector<16x32xf32>
    %121 = arith.addf %119, %120 : vector<16x32xf32>
    %122 = arith.addf %121, %0 : vector<16x32xf32>
    %cst_49 = arith.constant dense<0.000000e+00> : vector<16xf32>
    %123 = vector.multi_reduction <add>, %122, %cst_49 [1] : vector<16x32xf32> to vector<16xf32>
    %124 = vector.shape_cast %123 : vector<16xf32> to vector<16x1xf32>
    %cst_50 = arith.constant 3.200000e+01 : f32
    %125 = vector.broadcast %cst_50 : f32 to vector<16x1xf32>
    %126 = arith.divf %124, %125 : vector<16x1xf32>
    %127 = vector.broadcast %126 : vector<16x1xf32> to vector<16x32xf32>
    %128 = arith.subf %122, %127 : vector<16x32xf32>
    %129 = arith.mulf %128, %128 : vector<16x32xf32>
    %cst_51 = arith.constant dense<0.000000e+00> : vector<16xf32>
    %130 = vector.multi_reduction <add>, %129, %cst_51 [1] : vector<16x32xf32> to vector<16xf32>
    %131 = vector.shape_cast %130 : vector<16xf32> to vector<16x1xf32>
    %cst_52 = arith.constant 3.200000e+01 : f32
    %132 = vector.broadcast %cst_52 : f32 to vector<16x1xf32>
    %133 = arith.divf %131, %132 : vector<16x1xf32>
    %134 = vector.broadcast %126 : vector<16x1xf32> to vector<16x32xf32>
    %135 = arith.subf %122, %134 : vector<16x32xf32>
    %cst_53 = arith.constant 9.99999996E-13 : f32
    %136 = vector.broadcast %cst_53 : f32 to vector<16x1xf32>
    %137 = arith.addf %133, %136 : vector<16x1xf32>
    %138 = math.rsqrt %137 : vector<16x1xf32>
    %139 = vector.broadcast %138 : vector<16x1xf32> to vector<16x32xf32>
    %140 = arith.mulf %135, %139 : vector<16x32xf32>
    %141 = vector.broadcast %12 : vector<1x32xf32> to vector<16x32xf32>
    %142 = arith.mulf %140, %141 : vector<16x32xf32>
    %143 = vector.broadcast %13 : vector<1x32xf32> to vector<16x32xf32>
    %144 = arith.addf %142, %143 : vector<16x32xf32>
    %cst_54 = arith.constant dense<0.000000e+00> : vector<16x64xf32>
    %145 = tpu.matmul %144, %6, %cst_54 {dimension_numbers = #tpu.dot_dimension_numbers<[1], [0], [0], [1], [0, 0, 1, 1], [], []>} : vector<16x32xf32>, vector<32x64xf32>, vector<16x64xf32> -> vector<16x64xf32>
    %146 = vector.broadcast %10 : vector<1x64xf32> to vector<16x64xf32>
    %147 = arith.addf %145, %146 : vector<16x64xf32>
    %cst_55 = arith.constant 5.000000e-01 : f32
    %148 = vector.broadcast %cst_55 : f32 to vector<16x64xf32>
    %149 = arith.mulf %148, %147 : vector<16x64xf32>
    %cst_56 = arith.constant 0.707106769 : f32
    %150 = vector.broadcast %cst_56 : f32 to vector<16x64xf32>
    %151 = arith.mulf %147, %150 : vector<16x64xf32>
    %152 = math.erf %151 : vector<16x64xf32>
    %cst_57 = arith.constant 1.000000e+00 : f32
    %153 = vector.broadcast %cst_57 : f32 to vector<16x64xf32>
    %154 = arith.addf %153, %152 : vector<16x64xf32>
    %155 = arith.mulf %149, %154 : vector<16x64xf32>
    %cst_58 = arith.constant dense<0.000000e+00> : vector<16x32xf32>
    %156 = tpu.matmul %155, %7, %cst_58 {dimension_numbers = #tpu.dot_dimension_numbers<[1], [0], [0], [1], [0, 0, 1, 1], [], []>} : vector<16x64xf32>, vector<64x32xf32>, vector<16x32xf32> -> vector<16x32xf32>
    %157 = vector.broadcast %14 : vector<1x32xf32> to vector<16x32xf32>
    %158 = arith.addf %156, %157 : vector<16x32xf32>
    %159 = arith.addf %158, %144 : vector<16x32xf32>
    %cst_59 = arith.constant dense<0.000000e+00> : vector<16xf32>
    %160 = vector.multi_reduction <add>, %159, %cst_59 [1] : vector<16x32xf32> to vector<16xf32>
    %161 = vector.shape_cast %160 : vector<16xf32> to vector<16x1xf32>
    %cst_60 = arith.constant 3.200000e+01 : f32
    %162 = vector.broadcast %cst_60 : f32 to vector<16x1xf32>
    %163 = arith.divf %161, %162 : vector<16x1xf32>
    %164 = vector.broadcast %163 : vector<16x1xf32> to vector<16x32xf32>
    %165 = arith.subf %159, %164 : vector<16x32xf32>
    %166 = arith.mulf %165, %165 : vector<16x32xf32>
    %cst_61 = arith.constant dense<0.000000e+00> : vector<16xf32>
    %167 = vector.multi_reduction <add>, %166, %cst_61 [1] : vector<16x32xf32> to vector<16xf32>
    %168 = vector.shape_cast %167 : vector<16xf32> to vector<16x1xf32>
    %cst_62 = arith.constant 3.200000e+01 : f32
    %169 = vector.broadcast %cst_62 : f32 to vector<16x1xf32>
    %170 = arith.divf %168, %169 : vector<16x1xf32>
    %171 = vector.broadcast %163 : vector<16x1xf32> to vector<16x32xf32>
    %172 = arith.subf %159, %171 : vector<16x32xf32>
    %cst_63 = arith.constant 9.99999996E-13 : f32
    %173 = vector.broadcast %cst_63 : f32 to vector<16x1xf32>
    %174 = arith.addf %170, %173 : vector<16x1xf32>
    %175 = math.rsqrt %174 : vector<16x1xf32>
    %176 = vector.broadcast %175 : vector<16x1xf32> to vector<16x32xf32>
    %177 = arith.mulf %172, %176 : vector<16x32xf32>
    %178 = vector.broadcast %15 : vector<1x32xf32> to vector<16x32xf32>
    %179 = arith.mulf %177, %178 : vector<16x32xf32>
    %180 = vector.broadcast %16 : vector<1x32xf32> to vector<16x32xf32>
    %181 = arith.addf %179, %180 : vector<16x32xf32>
    %c0_64 = arith.constant 0 : index
    %c0_65 = arith.constant 0 : index
    %182 = vector.load %arg4[%c0_64, %c0_65] : memref<16x32xf32, #tpu.memory_space<vmem>>, vector<16x32xf32>
    tpu.vector_store %arg4[%c0_64, %c0_65], %181 {strides = array<i32>} : memref<16x32xf32, #tpu.memory_space<vmem>>, vector<16x32xf32>,
    return
  }
}

</mosaic_0001>

<llo_original>
// kernel: eq.8
$region0: #{eq.8}
  %s0 = inlined_call_operand.vmem [shape: s32[2,8], index: 0, kind: input, shape index: {}]
  %s1 = inlined_call_operand.vmem [shape: s32[16], index: 1, kind: output, shape index: {}]
  $region1: #{eq.8} parent=0
    #allocation0 [shape = 'u8[4096]{0}', space=vmem, size = 0x1000, scoped, tag = 'scoped mem for output reshape']
    #allocation1 [shape = 'u8[4096]{0}', space=vmem, size = 0x1000, scoped, tag = 'scoped mem for input reshape']
    %s3 = sshllo.u32 0, 2
    %v4 = vld [vmem:[%s0] sm:%s3]
    %5 = vst [vmem:[#allocation1] sm:%s3] %v4
    %v6 = vld [vmem:[#allocation1] sm:$0x1]
    %vm7 = vcmask 64512
    %8 = vst.msk [vmem:[#allocation0] sm:$0x1] %vm7, %v6
    %s9 = scalar_lea.vmem [#allocation1], 1
    %v10 = vld [vmem:[%s9] sm:$0x1]
    %11 = vrot.lane.b32.xlu0 %v10, 8
    %v12 = vpop.permute.xlu0 %11
    %vm13 = vcmask 130112
    %14 = vst.msk [vmem:[#allocation0] sm:$0x1] %vm13, %v12
    %s16 = sshllo.u32 0, 1
    %v18 = vld [vmem:[#allocation0] sm:%s16]
    %s19 = sshllo.u32 0, 1
    %20 = vst [vmem:[%s1] sm:%s19] %v18

// kernel: bert_cross_attention_layer.1
$region0: #{bert_cross_attention_layer.1}
  #allocation0 [shape = 'u32[]', space=smem, size = 0x4, offset = 0x4, fixed_abs, tag = 'smem constant byte address 0x4 - core index']
  #allocation1 [shape = 'u32[144,128]{1,0:T(1,128)}', space=vmem, size = 0x12000, scoped, tag = 'internal scratch']
  %s0 = inlined_call_operand.vmem [shape: f32[16,32], index: 0, kind: input, shape index: {}]
  %s1 = inlined_call_operand.vmem [shape: f32[16,32], index: 1, kind: input, shape index: {}]
  %s2 = inlined_call_operand.vmem [shape: f32[16,16], index: 2, kind: input, shape index: {}]
  %s3 = inlined_call_operand.vmem [shape: f32[168,128], index: 3, kind: input, shape index: {}]
  %s4 = inlined_call_operand.hbm [shape: f32[16,32], index: 4, kind: output, shape index: {}]
  %s5 = sld [smem:[#allocation0]]
  $region26: #{bert_cross_attention_layer.1} parent=0
    _
  %s7 = ssub.s32 1, %s5
  %s8 = scalar_select 0, %s7, %s5
  $region1: #{bert_cross_attention_layer.1} parent=0
    #allocation2 [shape = 'u8[8192]{0}', space=vmem, size = 0x2000, scoped, tag = 'output window, operand 0, single buffered']
    #allocation3 [shape = 's32[1]{0}', space=sflag, size = 0x4, scoped, tag = 'scoped memory for bert_cross_attention_layer.1']
    %9 = vsyncpa [#allocation3], 0
    // Predicated region
    $region2: #{bert_cross_attention_layer.1} parent=1 // pred_check
      _
    $region3: #{bert_cross_attention_layer.1} parent=1 // pred_check_branch
      %11 = sbr.rel (0) target = $region5
    $region4: #{bert_cross_attention_layer.1} parent=1 // pred_region
      _
    $region5: #{bert_cross_attention_layer.1} parent=1 // pred_fallthru
      _
    // Predicated region
    $region6: #{bert_cross_attention_layer.1} parent=1 // pred_check
      _
    $region7: #{bert_cross_attention_layer.1} parent=1 // pred_check_branch
      %13 = sbr.rel (0) target = $region9
    $region8: #{bert_cross_attention_layer.1} parent=1 // pred_region
      _
    $region9: #{bert_cross_attention_layer.1} parent=1 // pred_fallthru
      _
    // Predicated region
    $region10: #{bert_cross_attention_layer.1} parent=1 // pred_check
      _
    $region11: #{bert_cross_attention_layer.1} parent=1 // pred_check_branch
      %15 = sbr.rel (0) target = $region13
    $region12: #{bert_cross_attention_layer.1} parent=1 // pred_region
      _
    $region13: #{bert_cross_attention_layer.1} parent=1 // pred_fallthru
      _
    // Predicated region
    $region14: #{bert_cross_attention_layer.1} parent=1 // pred_check
      _
    $region15: #{bert_cross_attention_layer.1} parent=1 // pred_check_branch
      %17 = sbr.rel (0) target = $region17
    $region16: #{bert_cross_attention_layer.1} parent=1 // pred_region
      _
    $region17: #{bert_cross_attention_layer.1} parent=1 // pred_fallthru
      _
    %v18 = vld [vmem:[%s0] sm:$0xff]
    %v19 = vld [vmem:[%s0 + $0x8] sm:$0xff]
    %v20 = vld [vmem:[%s1] sm:$0xff]
    %v21 = vld [vmem:[%s1 + $0x8] sm:$0xff]
    %v22 = vld [vmem:[%s2] sm:$0xff]
    %v23 = vld [vmem:[%s2 + $0x8] sm:$0xff]
    %v24 = vld [vmem:[%s3] sm:$0xff]
    %v25 = vld [vmem:[%s3 + $0x8] sm:$0xff]
    %v26 = vld [vmem:[%s3 + $0x10] sm:$0xff]
    %v27 = vld [vmem:[%s3 + $0x18] sm:$0xff]
    %v28 = vld [vmem:[%s3 + $0x20] sm:$0xff]
    %v29 = vld [vmem:[%s3 + $0x28] sm:$0xff]
    %v30 = vld [vmem:[%s3 + $0x30] sm:$0xff]
    %v31 = vld [vmem:[%s3 + $0x38] sm:$0xff]
    %v32 = vld [vmem:[%s3 + $0x40] sm:$0xff]
    %v33 = vld [vmem:[%s3 + $0x48] sm:$0xff]
    %v34 = vld [vmem:[%s3 + $0x50] sm:$0xff]
    %v35 = vld [vmem:[%s3 + $0x58] sm:$0xff]
    %v36 = vld [vmem:[%s3 + $0x60] sm:$0xff]
    %v37 = vld [vmem:[%s3 + $0x68] sm:$0xff]
    %v38 = vld [vmem:[%s3 + $0x70] sm:$0xff]
    %v39 = vld [vmem:[%s3 + $0x78] sm:$0xff]
    %v40 = vld [vmem:[%s3 + $0x80] sm:$0xff]
    %v41 = vld [vmem:[%s3 + $0x88] sm:$0xff]
    %v42 = vld [vmem:[%s3 + $0x90] sm:$0xff]
    %v43 = vld [vmem:[%s3 + $0x98] sm:$0xff]
    %v44 = vld [vmem:[%s3 + $0xa0] sm:$0x1]
    %v45 = vld [vmem:[%s3 + $0xa1] sm:$0x1]
    %v46 = vld [vmem:[%s3 + $0xa2] sm:$0x1]
    %v47 = vld [vmem:[%s3 + $0xa3] sm:$0x1]
    %v48 = vld [vmem:[%s3 + $0xa4] sm:$0x1]
    %v49 = vld [vmem:[%s3 + $0xa5] sm:$0x1]
    %v50 = vld [vmem:[%s3 + $0xa6] sm:$0x1]
    %v51 = vld [vmem:[%s3 + $0xa7] sm:$0x1]
    %v52 = vlaneseq
    %v53 = vshrl.u32 %v52, 7
    %v54 = vsub.s32 0, %v53
    %v55 = vrot.slane %v44, %v54
    %vm56 = vcmask 261120
    %v58 = vsel %vm56, %v18, 0
    %v61 = vsel %vm56, %v19, 0
    %63 = vmatprep.subr.mxu0 0.0
    %64 = vmatpush1.msra.mxu0 %v24
    %65 = vmatprep.subr.mxu0 0.0
    %66 = vmatpush1.msra.mxu0 %v25
    %67 = vmatprep.subr.mxu0 0.0
    %68 = vmatpush1.msra.mxu0 %v26
    %69 = vmatprep.subr.mxu0 0.0
    %70 = vmatpush1.msra.mxu0 %v27
    %71 = vmatprep.subr.mxu0 0.0
    %72 = vmatpush1.msra.mxu0 0.0
    %73 = vmatprep.subr.mxu0 0.0
    %74 = vmatpush1.msra.mxu0 0.0
    %75 = vmatprep.subr.mxu0 0.0
    %76 = vmatpush1.msra.mxu0 0.0
    %77 = vmatprep.subr.mxu0 0.0
    %78 = vmatpush1.msra.mxu0 0.0
    %79 = vmatprep.subr.mxu0 0.0
    %80 = vmatpush1.msra.mxu0 0.0
    %81 = vmatprep.subr.mxu0 0.0
    %82 = vmatpush1.msra.mxu0 0.0
    %83 = vmatprep.subr.mxu0 0.0
    %84 = vmatpush1.msra.mxu0 0.0
    %85 = vmatprep.subr.mxu0 0.0
    %86 = vmatpush1.msra.mxu0 0.0
    %87 = vmatprep.subr.mxu0 0.0
    %88 = vmatpush1.msra.mxu0 0.0
    %89 = vmatprep.subr.mxu0 0.0
    %90 = vmatpush1.msra.mxu0 0.0
    %91 = vmatprep.subr.mxu0 0.0
    %92 = vmatpush1.msra.mxu0 0.0
    %93 = vmatprep.subr.mxu0 0.0
    %94 = vmatpush1.msra.mxu0 0.0
    %95 = vmatprep.subr.mxu0 0.0
    %96 = vmatpush1.msra.mxu0 0.0
    %97 = vmatprep.subr.mxu0 0.0
    %98 = vmatpush1.msra.mxu0 0.0
    %99 = vmatprep.subr.mxu0 0.0
    %100 = vmatpush1.msra.mxu0 0.0
    %101 = vmatprep.subr.mxu0 0.0
    %102 = vmatpush1.msra.mxu0 0.0
    %103 = vmatprep.subr.mxu0 0.0
    %104 = vmatpush1.msra.mxu0 0.0
    %105 = vmatprep.subr.mxu0 0.0
    %106 = vmatpush1.msra.mxu0 0.0
    %107 = vmatprep.subr.mxu0 0.0
    %108 = vmatpush1.msra.mxu0 0.0
    %109 = vmatprep.subr.mxu0 0.0
    %110 = vmatpush1.msra.mxu0 0.0
    %111 = vmatprep.subr.mxu0 0.0
    %112 = vmatpush1.msra.mxu0 0.0
    %113 = vmatprep.subr.mxu0 0.0
    %114 = vmatpush1.msra.mxu0 0.0
    %115 = vmatprep.subr.mxu0 0.0
    %116 = vmatpush1.msra.mxu0 0.0
    %117 = vmatprep.subr.mxu0 0.0
    %118 = vmatpush1.msra.mxu0 0.0
    %119 = vmatprep.subr.mxu0 0.0
    %120 = vmatpush1.msra.mxu0 0.0
    %121 = vmatprep.subr.mxu0 0.0
    %122 = vmatpush1.msra.mxu0 0.0
    %123 = vmatprep.subr.mxu0 0.0
    %124 = vmatpush1.msra.mxu0 0.0
    %125 = vmatprep.subr.mxu0 0.0
    %126 = vmatpush1.msra.mxu0 0.0
    %127 = vmatprep.mubr.f32.mxu0 0.0
    %128 = vmatmul.mubr.f32.gmra.mrb[0].mxu0 %v58
    %v129 = vpop.f32.mrb[0].mxu0
    %v130 = vadd.f32 %v55, %v129
    %v131 = vpop.f32.mrb[0].mxu0
    %132 = vmatprep.mubr.f32.mxu0 0.0
    %133 = vmatmul.mubr.f32.gmra.mrb[0].mxu0 %v61
    %v134 = vpop.f32.mrb[0].mxu0
    %v135 = vadd.f32 %v55, %v134
    %v136 = vpop.f32.mrb[0].mxu0
    %137 = vdwg.mxu0
    %v138 = vmul.f32 %v130, 0.35355338
    %v139 = vmul.f32 %v135, 0.35355338
    %144 = vrot.lane.b32.xlu0 %v24, 96
    %v145 = vpop.permute.xlu0 %144
    %146 = vrot.lane.b32.xlu0 %v25, 96
    %v147 = vpop.permute.xlu0 %146
    %148 = vrot.lane.b32.xlu0 %v26, 96
    %v149 = vpop.permute.xlu0 %148
    %150 = vrot.lane.b32.xlu0 %v27, 96
    %v151 = vpop.permute.xlu0 %150
    %157 = vrot.lane.b32.xlu0 %v55, 96
    %v158 = vpop.permute.xlu0 %157
    %v161 = vsel %vm56, %v20, 0
    %v164 = vsel %vm56, %v21, 0
    %166 = vmatprep.subr.mxu0 0.0
    %167 = vmatpush1.msra.mxu0 %v145
    %168 = vmatprep.subr.mxu0 0.0
    %169 = vmatpush1.msra.mxu0 %v147
    %170 = vmatprep.subr.mxu0 0.0
    %171 = vmatpush1.msra.mxu0 %v149
    %172 = vmatprep.subr.mxu0 0.0
    %173 = vmatpush1.msra.mxu0 %v151
    %174 = vmatprep.subr.mxu0 0.0
    %175 = vmatpush1.msra.mxu0 0.0
    %176 = vmatprep.subr.mxu0 0.0
    %177 = vmatpush1.msra.mxu0 0.0
    %178 = vmatprep.subr.mxu0 0.0
    %179 = vmatpush1.msra.mxu0 0.0
    %180 = vmatprep.subr.mxu0 0.0
    %181 = vmatpush1.msra.mxu0 0.0
    %182 = vmatprep.subr.mxu0 0.0
    %183 = vmatpush1.msra.mxu0 0.0
    %184 = vmatprep.subr.mxu0 0.0
    %185 = vmatpush1.msra.mxu0 0.0
    %186 = vmatprep.subr.mxu0 0.0
    %187 = vmatpush1.msra.mxu0 0.0
    %188 = vmatprep.subr.mxu0 0.0
    %189 = vmatpush1.msra.mxu0 0.0
    %190 = vmatprep.subr.mxu0 0.0
    %191 = vmatpush1.msra.mxu0 0.0
    %192 = vmatprep.subr.mxu0 0.0
    %193 = vmatpush1.msra.mxu0 0.0
    %194 = vmatprep.subr.mxu0 0.0
    %195 = vmatpush1.msra.mxu0 0.0
    %196 = vmatprep.subr.mxu0 0.0
    %197 = vmatpush1.msra.mxu0 0.0
    %198 = vmatprep.subr.mxu0 0.0
    %199 = vmatpush1.msra.mxu0 0.0
    %200 = vmatprep.subr.mxu0 0.0
    %201 = vmatpush1.msra.mxu0 0.0
    %202 = vmatprep.subr.mxu0 0.0
    %203 = vmatpush1.msra.mxu0 0.0
    %204 = vmatprep.subr.mxu0 0.0
    %205 = vmatpush1.msra.mxu0 0.0
    %206 = vmatprep.subr.mxu0 0.0
    %207 = vmatpush1.msra.mxu0 0.0
    %208 = vmatprep.subr.mxu0 0.0
    %209 = vmatpush1.msra.mxu0 0.0
    %210 = vmatprep.subr.mxu0 0.0
    %211 = vmatpush1.msra.mxu0 0.0
    %212 = vmatprep.subr.mxu0 0.0
    %213 = vmatpush1.msra.mxu0 0.0
    %214 = vmatprep.subr.mxu0 0.0
    %215 = vmatpush1.msra.mxu0 0.0
    %216 = vmatprep.subr.mxu0 0.0
    %217 = vmatpush1.msra.mxu0 0.0
    %218 = vmatprep.subr.mxu0 0.0
    %219 = vmatpush1.msra.mxu0 0.0
    %220 = vmatprep.subr.mxu0 0.0
    %221 = vmatpush1.msra.mxu0 0.0
    %222 = vmatprep.subr.mxu0 0.0
    %223 = vmatpush1.msra.mxu0 0.0
    %224 = vmatprep.subr.mxu0 0.0
    %225 = vmatpush1.msra.mxu0 0.0
    %226 = vmatprep.subr.mxu0 0.0
    %227 = vmatpush1.msra.mxu0 0.0
    %228 = vmatprep.subr.mxu0 0.0
    %229 = vmatpush1.msra.mxu0 0.0
    %230 = vmatprep.mubr.f32.mxu0 0.0
    %231 = vmatmul.mubr.f32.gmra.mrb[0].mxu0 %v161
    %v232 = vpop.f32.mrb[0].mxu0
    %v233 = vadd.f32 %v158, %v232
    %v234 = vpop.f32.mrb[0].mxu0
    %235 = vmatprep.mubr.f32.mxu0 0.0
    %236 = vmatmul.mubr.f32.gmra.mrb[0].mxu0 %v164
    %v237 = vpop.f32.mrb[0].mxu0
    %v238 = vadd.f32 %v158, %v237
    %v239 = vpop.f32.mrb[0].mxu0
    %240 = vdwg.mxu0
    %vm241 = vcmask 64512
    %v243 = vsel %vm241, %v138, 0
    %v246 = vsel %vm241, %v139, 0
    %v249 = vsel %vm241, %v233, 0
    %v252 = vsel %vm241, %v238, 0
    %254 = vmatprep.subr.mxu0 0.0
    %255 = vmatpush1.xpose.msra.mxu0 %v249
    %256 = vmatprep.subr.mxu0 0.0
    %257 = vmatpush1.xpose.msra.mxu0 %v252
    %258 = vmatprep.subr.mxu0 0.0
    %259 = vmatpush1.xpose.msra.mxu0 0.0
    %260 = vmatprep.subr.mxu0 0.0
    %261 = vmatpush1.xpose.msra.mxu0 0.0
    %262 = vmatprep.subr.mxu0 0.0
    %263 = vmatpush1.xpose.msra.mxu0 0.0
    %264 = vmatprep.subr.mxu0 0.0
    %265 = vmatpush1.xpose.msra.mxu0 0.0
    %266 = vmatprep.subr.mxu0 0.0
    %267 = vmatpush1.xpose.msra.mxu0 0.0
    %268 = vmatprep.subr.mxu0 0.0
    %269 = vmatpush1.xpose.msra.mxu0 0.0
    %270 = vmatprep.subr.mxu0 0.0
    %271 = vmatpush1.xpose.msra.mxu0 0.0
    %272 = vmatprep.subr.mxu0 0.0
    %273 = vmatpush1.xpose.msra.mxu0 0.0
    %274 = vmatprep.subr.mxu0 0.0
    %275 = vmatpush1.xpose.msra.mxu0 0.0
    %276 = vmatprep.subr.mxu0 0.0
    %277 = vmatpush1.xpose.msra.mxu0 0.0
    %278 = vmatprep.subr.mxu0 0.0
    %279 = vmatpush1.xpose.msra.mxu0 0.0
    %280 = vmatprep.subr.mxu0 0.0
    %281 = vmatpush1.xpose.msra.mxu0 0.0
    %282 = vmatprep.subr.mxu0 0.0
    %283 = vmatpush1.xpose.msra.mxu0 0.0
    %284 = vmatprep.subr.mxu0 0.0
    %285 = vmatpush1.xpose.msra.mxu0 0.0
    %286 = vmatprep.subr.mxu0 0.0
    %287 = vmatpush1.xpose.msra.mxu0 0.0
    %288 = vmatprep.subr.mxu0 0.0
    %289 = vmatpush1.xpose.msra.mxu0 0.0
    %290 = vmatprep.subr.mxu0 0.0
    %291 = vmatpush1.xpose.msra.mxu0 0.0
    %292 = vmatprep.subr.mxu0 0.0
    %293 = vmatpush1.xpose.msra.mxu0 0.0
    %294 = vmatprep.subr.mxu0 0.0
    %295 = vmatpush1.xpose.msra.mxu0 0.0
    %296 = vmatprep.subr.mxu0 0.0
    %297 = vmatpush1.xpose.msra.mxu0 0.0
    %298 = vmatprep.subr.mxu0 0.0
    %299 = vmatpush1.xpose.msra.mxu0 0.0
    %300 = vmatprep.subr.mxu0 0.0
    %301 = vmatpush1.xpose.msra.mxu0 0.0
    %302 = vmatprep.subr.mxu0 0.0
    %303 = vmatpush1.xpose.msra.mxu0 0.0
    %304 = vmatprep.subr.mxu0 0.0
    %305 = vmatpush1.xpose.msra.mxu0 0.0
    %306 = vmatprep.subr.mxu0 0.0
    %307 = vmatpush1.xpose.msra.mxu0 0.0
    %308 = vmatprep.subr.mxu0 0.0
    %309 = vmatpush1.xpose.msra.mxu0 0.0
    %310 = vmatprep.subr.mxu0 0.0
    %311 = vmatpush1.xpose.msra.mxu0 0.0
    %312 = vmatprep.subr.mxu0 0.0
    %313 = vmatpush1.xpose.msra.mxu0 0.0
    %314 = vmatprep.subr.mxu0 0.0
    %315 = vmatpush1.xpose.msra.mxu0 0.0
    %316 = vmatprep.subr.mxu0 0.0
    %317 = vmatpush1.xpose.msra.mxu0 0.0
    %318 = vmatprep.mubr.f32.mxu0 0.0
    %319 = vmatmul.mubr.f32.gmra.mrb[0].mxu0 %v243
    %v320 = vpop.f32.mrb[0].mxu0
    %v321 = vadd.f32 %v22, %v320
    %v322 = vpop.f32.mrb[0].mxu0
    %323 = vmatprep.mubr.f32.mxu0 0.0
    %324 = vmatmul.mubr.f32.gmra.mrb[0].mxu0 %v246
    %v325 = vpop.f32.mrb[0].mxu0
    %v326 = vadd.f32 %v23, %v325
    %v327 = vpop.f32.mrb[0].mxu0
    %328 = vdwg.mxu0
    %vm329 = vcmask 130048
    %v330 = vsel %vm329, %v321, -inf
    %331 = vmax.xlane.f32.xlu0 %v330
    %v332 = vpop.xlane.xlu0 %331
    %v333 = vsel %vm329, %v326, -inf
    %334 = vmax.xlane.f32.xlu0 %v333
    %v335 = vpop.xlane.xlu0 %334
    %v336 = vsub.f32 %v321, %v332
    %v337 = vsub.f32 %v326, %v335
    %v338 = vmul.f32 %v336, 1.442695
    %v339 = vpow.pop %v338
    %v340 = vmul.f32 %v337, 1.442695
    %v341 = vpow.pop %v340
    %v342 = vsel %vm329, %v339, 0.0
    %343 = vadd.xlane.f32.xlu0 %v342
    %v344 = vpop.xlane.xlu0 %343
    %v345 = vsel %vm329, %v341, 0.0
    %346 = vadd.xlane.f32.xlu0 %v345
    %v347 = vpop.xlane.xlu0 %346
    %v348 = vrcp.pop %v344
    %v349 = vrcp.pop %v347
    %v350 = vmul.f32 %v344, %v348
    %v351 = vmul.f32 %v347, %v349
    %v352 = vsub.f32 2.0, %v350
    %v353 = vsub.f32 2.0, %v351
    %v354 = vmul.f32 %v348, %v352
    %v355 = vmul.f32 %v349, %v353
    %v356 = vmul.f32 %v339, %v354
    %v357 = vmul.f32 %v341, %v355
    %358 = vrot.lane.b32.xlu0 %v233, 96
    %v359 = vpop.permute.xlu0 %358
    %360 = vrot.lane.b32.xlu0 %v238, 96
    %v361 = vpop.permute.xlu0 %360
    %v365 = vsel %vm329, %v356, 0
    %v368 = vsel %vm329, %v357, 0
    %370 = vmatprep.subr.mxu0 0.0
    %371 = vmatpush1.msra.mxu0 %v359
    %372 = vmatprep.subr.mxu0 0.0
    %373 = vmatpush1.msra.mxu0 %v361
    %374 = vmatprep.subr.mxu0 0.0
    %375 = vmatpush1.msra.mxu0 0.0
    %376 = vmatprep.subr.mxu0 0.0
    %377 = vmatpush1.msra.mxu0 0.0
    %378 = vmatprep.subr.mxu0 0.0
    %379 = vmatpush1.msra.mxu0 0.0
    %380 = vmatprep.subr.mxu0 0.0
    %381 = vmatpush1.msra.mxu0 0.0
    %382 = vmatprep.subr.mxu0 0.0
    %383 = vmatpush1.msra.mxu0 0.0
    %384 = vmatprep.subr.mxu0 0.0
    %385 = vmatpush1.msra.mxu0 0.0
    %386 = vmatprep.subr.mxu0 0.0
    %387 = vmatpush1.msra.mxu0 0.0
    %388 = vmatprep.subr.mxu0 0.0
    %389 = vmatpush1.msra.mxu0 0.0
    %390 = vmatprep.subr.mxu0 0.0
    %391 = vmatpush1.msra.mxu0 0.0
    %392 = vmatprep.subr.mxu0 0.0
    %393 = vmatpush1.msra.mxu0 0.0
    %394 = vmatprep.subr.mxu0 0.0
    %395 = vmatpush1.msra.mxu0 0.0
    %396 = vmatprep.subr.mxu0 0.0
    %397 = vmatpush1.msra.mxu0 0.0
    %398 = vmatprep.subr.mxu0 0.0
    %399 = vmatpush1.msra.mxu0 0.0
    %400 = vmatprep.subr.mxu0 0.0
    %401 = vmatpush1.msra.mxu0 0.0
    %402 = vmatprep.subr.mxu0 0.0
    %403 = vmatpush1.msra.mxu0 0.0
    %404 = vmatprep.subr.mxu0 0.0
    %405 = vmatpush1.msra.mxu0 0.0
    %406 = vmatprep.subr.mxu0 0.0
    %407 = vmatpush1.msra.mxu0 0.0
    %408 = vmatprep.subr.mxu0 0.0
    %409 = vmatpush1.msra.mxu0 0.0
    %410 = vmatprep.subr.mxu0 0.0
    %411 = vmatpush1.msra.mxu0 0.0
    %412 = vmatprep.subr.mxu0 0.0
    %413 = vmatpush1.msra.mxu0 0.0
    %414 = vmatprep.subr.mxu0 0.0
    %415 = vmatpush1.msra.mxu0 0.0
    %416 = vmatprep.subr.mxu0 0.0
    %417 = vmatpush1.msra.mxu0 0.0
    %418 = vmatprep.subr.mxu0 0.0
    %419 = vmatpush1.msra.mxu0 0.0
    %420 = vmatprep.subr.mxu0 0.0
    %421 = vmatpush1.msra.mxu0 0.0
    %422 = vmatprep.subr.mxu0 0.0
    %423 = vmatpush1.msra.mxu0 0.0
    %424 = vmatprep.subr.mxu0 0.0
    %425 = vmatpush1.msra.mxu0 0.0
    %426 = vmatprep.subr.mxu0 0.0
    %427 = vmatpush1.msra.mxu0 0.0
    %428 = vmatprep.subr.mxu0 0.0
    %429 = vmatpush1.msra.mxu0 0.0
    %430 = vmatprep.subr.mxu0 0.0
    %431 = vmatpush1.msra.mxu0 0.0
    %432 = vmatprep.subr.mxu0 0.0
    %433 = vmatpush1.msra.mxu0 0.0
    %434 = vmatprep.mubr.f32.mxu0 0.0
    %435 = vmatmul.mubr.f32.gmra.mrb[0].mxu0 %v365
    %v436 = vpop.f32.mrb[0].mxu0
    %v437 = vadd.f32 0.0, %v436
    %v438 = vpop.f32.mrb[0].mxu0
    %439 = vmatprep.mubr.f32.mxu0 0.0
    %440 = vmatmul.mubr.f32.gmra.mrb[0].mxu0 %v368
    %v441 = vpop.f32.mrb[0].mxu0
    %v442 = vadd.f32 0.0, %v441
    %v443 = vpop.f32.mrb[0].mxu0
    %444 = vdwg.mxu0
    %445 = vrot.lane.b32.xlu0 %v138, 120
    %v446 = vpop.permute.xlu0 %445
    %447 = vrot.lane.b32.xlu0 %v139, 120
    %v448 = vpop.permute.xlu0 %447
    %449 = vrot.lane.b32.xlu0 %v233, 120
    %v450 = vpop.permute.xlu0 %449
    %451 = vrot.lane.b32.xlu0 %v238, 120
    %v452 = vpop.permute.xlu0 %451
    %v453 = vsel %vm241, %v446, 0
    %v455 = vsel %vm241, %v448, 0
    %v457 = vsel %vm241, %v450, 0
    %v459 = vsel %vm241, %v452, 0
    %461 = vmatprep.subr.mxu0 0.0
    %462 = vmatpush1.xpose.msra.mxu0 %v457
    %463 = vmatprep.subr.mxu0 0.0
    %464 = vmatpush1.xpose.msra.mxu0 %v459
    %465 = vmatprep.subr.mxu0 0.0
    %466 = vmatpush1.xpose.msra.mxu0 0.0
    %467 = vmatprep.subr.mxu0 0.0
    %468 = vmatpush1.xpose.msra.mxu0 0.0
    %469 = vmatprep.subr.mxu0 0.0
    %470 = vmatpush1.xpose.msra.mxu0 0.0
    %471 = vmatprep.subr.mxu0 0.0
    %472 = vmatpush1.xpose.msra.mxu0 0.0
    %473 = vmatprep.subr.mxu0 0.0
    %474 = vmatpush1.xpose.msra.mxu0 0.0
    %475 = vmatprep.subr.mxu0 0.0
    %476 = vmatpush1.xpose.msra.mxu0 0.0
    %477 = vmatprep.subr.mxu0 0.0
    %478 = vmatpush1.xpose.msra.mxu0 0.0
    %479 = vmatprep.subr.mxu0 0.0
    %480 = vmatpush1.xpose.msra.mxu0 0.0
    %481 = vmatprep.subr.mxu0 0.0
    %482 = vmatpush1.xpose.msra.mxu0 0.0
    %483 = vmatprep.subr.mxu0 0.0
    %484 = vmatpush1.xpose.msra.mxu0 0.0
    %485 = vmatprep.subr.mxu0 0.0
    %486 = vmatpush1.xpose.msra.mxu0 0.0
    %487 = vmatprep.subr.mxu0 0.0
    %488 = vmatpush1.xpose.msra.mxu0 0.0
    %489 = vmatprep.subr.mxu0 0.0
    %490 = vmatpush1.xpose.msra.mxu0 0.0
    %491 = vmatprep.subr.mxu0 0.0
    %492 = vmatpush1.xpose.msra.mxu0 0.0
    %493 = vmatprep.subr.mxu0 0.0
    %494 = vmatpush1.xpose.msra.mxu0 0.0
    %495 = vmatprep.subr.mxu0 0.0
    %496 = vmatpush1.xpose.msra.mxu0 0.0
    %497 = vmatprep.subr.mxu0 0.0
    %498 = vmatpush1.xpose.msra.mxu0 0.0
    %499 = vmatprep.subr.mxu0 0.0
    %500 = vmatpush1.xpose.msra.mxu0 0.0
    %501 = vmatprep.subr.mxu0 0.0
    %502 = vmatpush1.xpose.msra.mxu0 0.0
    %503 = vmatprep.subr.mxu0 0.0
    %504 = vmatpush1.xpose.msra.mxu0 0.0
    %505 = vmatprep.subr.mxu0 0.0
    %506 = vmatpush1.xpose.msra.mxu0 0.0
    %507 = vmatprep.subr.mxu0 0.0
    %508 = vmatpush1.xpose.msra.mxu0 0.0
    %509 = vmatprep.subr.mxu0 0.0
    %510 = vmatpush1.xpose.msra.mxu0 0.0
    %511 = vmatprep.subr.mxu0 0.0
    %512 = vmatpush1.xpose.msra.mxu0 0.0
    %513 = vmatprep.subr.mxu0 0.0
    %514 = vmatpush1.xpose.msra.mxu0 0.0
    %515 = vmatprep.subr.mxu0 0.0
    %516 = vmatpush1.xpose.msra.mxu0 0.0
    %517 = vmatprep.subr.mxu0 0.0
    %518 = vmatpush1.xpose.msra.mxu0 0.0
    %519 = vmatprep.subr.mxu0 0.0
    %520 = vmatpush1.xpose.msra.mxu0 0.0
    %521 = vmatprep.subr.mxu0 0.0
    %522 = vmatpush1.xpose.msra.mxu0 0.0
    %523 = vmatprep.subr.mxu0 0.0
    %524 = vmatpush1.xpose.msra.mxu0 0.0
    %525 = vmatprep.mubr.f32.mxu0 0.0
    %526 = vmatmul.mubr.f32.gmra.mrb[0].mxu0 %v453
    %v527 = vpop.f32.mrb[0].mxu0
    %v528 = vadd.f32 %v22, %v527
    %v529 = vpop.f32.mrb[0].mxu0
    %530 = vmatprep.mubr.f32.mxu0 0.0
    %531 = vmatmul.mubr.f32.gmra.mrb[0].mxu0 %v455
    %v532 = vpop.f32.mrb[0].mxu0
    %v533 = vadd.f32 %v23, %v532
    %v534 = vpop.f32.mrb[0].mxu0
    %535 = vdwg.mxu0
    %v536 = vsel %vm329, %v528, -inf
    %537 = vmax.xlane.f32.xlu0 %v536
    %v538 = vpop.xlane.xlu0 %537
    %v539 = vsel %vm329, %v533, -inf
    %540 = vmax.xlane.f32.xlu0 %v539
    %v541 = vpop.xlane.xlu0 %540
    %v542 = vsub.f32 %v528, %v538
    %v543 = vsub.f32 %v533, %v541
    %v544 = vmul.f32 %v542, 1.442695
    %v545 = vpow.pop %v544
    %v546 = vmul.f32 %v543, 1.442695
    %v547 = vpow.pop %v546
    %v548 = vsel %vm329, %v545, 0.0
    %549 = vadd.xlane.f32.xlu0 %v548
    %v550 = vpop.xlane.xlu0 %549
    %v551 = vsel %vm329, %v547, 0.0
    %552 = vadd.xlane.f32.xlu0 %v551
    %v553 = vpop.xlane.xlu0 %552
    %v554 = vrcp.pop %v550
    %v555 = vrcp.pop %v553
    %v556 = vmul.f32 %v550, %v554
    %v557 = vmul.f32 %v553, %v555
    %v558 = vsub.f32 2.0, %v556
    %v559 = vsub.f32 2.0, %v557
    %v560 = vmul.f32 %v554, %v558
    %v561 = vmul.f32 %v555, %v559
    %v562 = vmul.f32 %v545, %v560
    %v563 = vmul.f32 %v547, %v561
    %564 = vrot.lane.b32.xlu0 %v233, 88
    %v565 = vpop.permute.xlu0 %564
    %566 = vrot.lane.b32.xlu0 %v238, 88
    %v567 = vpop.permute.xlu0 %566
    %v571 = vsel %vm329, %v562, 0
    %v574 = vsel %vm329, %v563, 0
    %576 = vmatprep.subr.mxu0 0.0
    %577 = vmatpush1.msra.mxu0 %v565
    %578 = vmatprep.subr.mxu0 0.0
    %579 = vmatpush1.msra.mxu0 %v567
    %580 = vmatprep.subr.mxu0 0.0
    %581 = vmatpush1.msra.mxu0 0.0
    %582 = vmatprep.subr.mxu0 0.0
    %583 = vmatpush1.msra.mxu0 0.0
    %584 = vmatprep.subr.mxu0 0.0
    %585 = vmatpush1.msra.mxu0 0.0
    %586 = vmatprep.subr.mxu0 0.0
    %587 = vmatpush1.msra.mxu0 0.0
    %588 = vmatprep.subr.mxu0 0.0
    %589 = vmatpush1.msra.mxu0 0.0
    %590 = vmatprep.subr.mxu0 0.0
    %591 = vmatpush1.msra.mxu0 0.0
    %592 = vmatprep.subr.mxu0 0.0
    %593 = vmatpush1.msra.mxu0 0.0
    %594 = vmatprep.subr.mxu0 0.0
    %595 = vmatpush1.msra.mxu0 0.0
    %596 = vmatprep.subr.mxu0 0.0
    %597 = vmatpush1.msra.mxu0 0.0
    %598 = vmatprep.subr.mxu0 0.0
    %599 = vmatpush1.msra.mxu0 0.0
    %600 = vmatprep.subr.mxu0 0.0
    %601 = vmatpush1.msra.mxu0 0.0
    %602 = vmatprep.subr.mxu0 0.0
    %603 = vmatpush1.msra.mxu0 0.0
    %604 = vmatprep.subr.mxu0 0.0
    %605 = vmatpush1.msra.mxu0 0.0
    %606 = vmatprep.subr.mxu0 0.0
    %607 = vmatpush1.msra.mxu0 0.0
    %608 = vmatprep.subr.mxu0 0.0
    %609 = vmatpush1.msra.mxu0 0.0
    %610 = vmatprep.subr.mxu0 0.0
    %611 = vmatpush1.msra.mxu0 0.0
    %612 = vmatprep.subr.mxu0 0.0
    %613 = vmatpush1.msra.mxu0 0.0
    %614 = vmatprep.subr.mxu0 0.0
    %615 = vmatpush1.msra.mxu0 0.0
    %616 = vmatprep.subr.mxu0 0.0
    %617 = vmatpush1.msra.mxu0 0.0
    %618 = vmatprep.subr.mxu0 0.0
    %619 = vmatpush1.msra.mxu0 0.0
    %620 = vmatprep.subr.mxu0 0.0
    %621 = vmatpush1.msra.mxu0 0.0
    %622 = vmatprep.subr.mxu0 0.0
    %623 = vmatpush1.msra.mxu0 0.0
    %624 = vmatprep.subr.mxu0 0.0
    %625 = vmatpush1.msra.mxu0 0.0
    %626 = vmatprep.subr.mxu0 0.0
    %627 = vmatpush1.msra.mxu0 0.0
    %628 = vmatprep.subr.mxu0 0.0
    %629 = vmatpush1.msra.mxu0 0.0
    %630 = vmatprep.subr.mxu0 0.0
    %631 = vmatpush1.msra.mxu0 0.0
    %632 = vmatprep.subr.mxu0 0.0
    %633 = vmatpush1.msra.mxu0 0.0
    %634 = vmatprep.subr.mxu0 0.0
    %635 = vmatpush1.msra.mxu0 0.0
    %636 = vmatprep.subr.mxu0 0.0
    %637 = vmatpush1.msra.mxu0 0.0
    %638 = vmatprep.subr.mxu0 0.0
    %639 = vmatpush1.msra.mxu0 0.0
    %640 = vmatprep.mubr.f32.mxu0 0.0
    %641 = vmatmul.mubr.f32.gmra.mrb[0].mxu0 %v571
    %v642 = vpop.f32.mrb[0].mxu0
    %v643 = vadd.f32 0.0, %v642
    %v644 = vpop.f32.mrb[0].mxu0
    %645 = vmatprep.mubr.f32.mxu0 0.0
    %646 = vmatmul.mubr.f32.gmra.mrb[0].mxu0 %v574
    %v647 = vpop.f32.mrb[0].mxu0
    %v648 = vadd.f32 0.0, %v647
    %v649 = vpop.f32.mrb[0].mxu0
    %650 = vdwg.mxu0
    %v652 = vsel %vm241, %v643, 0
    %v655 = vsel %vm241, %v648, 0
    %657 = vmatprep.subr.mxu0 0.0
    %658 = vmatpush1.msra.mxu0 %v29
    %659 = vmatprep.subr.mxu0 0.0
    %660 = vmatpush1.msra.mxu0 0.0
    %661 = vmatprep.subr.mxu0 0.0
    %662 = vmatpush1.msra.mxu0 0.0
    %663 = vmatprep.subr.mxu0 0.0
    %664 = vmatpush1.msra.mxu0 0.0
    %665 = vmatprep.subr.mxu0 0.0
    %666 = vmatpush1.msra.mxu0 0.0
    %667 = vmatprep.subr.mxu0 0.0
    %668 = vmatpush1.msra.mxu0 0.0
    %669 = vmatprep.subr.mxu0 0.0
    %670 = vmatpush1.msra.mxu0 0.0
    %671 = vmatprep.subr.mxu0 0.0
    %672 = vmatpush1.msra.mxu0 0.0
    %673 = vmatprep.subr.mxu0 0.0
    %674 = vmatpush1.msra.mxu0 0.0
    %675 = vmatprep.subr.mxu0 0.0
    %676 = vmatpush1.msra.mxu0 0.0
    %677 = vmatprep.subr.mxu0 0.0
    %678 = vmatpush1.msra.mxu0 0.0
    %679 = vmatprep.subr.mxu0 0.0
    %680 = vmatpush1.msra.mxu0 0.0
    %681 = vmatprep.subr.mxu0 0.0
    %682 = vmatpush1.msra.mxu0 0.0
    %683 = vmatprep.subr.mxu0 0.0
    %684 = vmatpush1.msra.mxu0 0.0
    %685 = vmatprep.subr.mxu0 0.0
    %686 = vmatpush1.msra.mxu0 0.0
    %687 = vmatprep.subr.mxu0 0.0
    %688 = vmatpush1.msra.mxu0 0.0
    %689 = vmatprep.subr.mxu0 0.0
    %690 = vmatpush1.msra.mxu0 0.0
    %691 = vmatprep.subr.mxu0 0.0
    %692 = vmatpush1.msra.mxu0 0.0
    %693 = vmatprep.subr.mxu0 0.0
    %694 = vmatpush1.msra.mxu0 0.0
    %695 = vmatprep.subr.mxu0 0.0
    %696 = vmatpush1.msra.mxu0 0.0
    %697 = vmatprep.subr.mxu0 0.0
    %698 = vmatpush1.msra.mxu0 0.0
    %699 = vmatprep.subr.mxu0 0.0
    %700 = vmatpush1.msra.mxu0 0.0
    %701 = vmatprep.subr.mxu0 0.0
    %702 = vmatpush1.msra.mxu0 0.0
    %703 = vmatprep.subr.mxu0 0.0
    %704 = vmatpush1.msra.mxu0 0.0
    %705 = vmatprep.subr.mxu0 0.0
    %706 = vmatpush1.msra.mxu0 0.0
    %707 = vmatprep.subr.mxu0 0.0
    %708 = vmatpush1.msra.mxu0 0.0
    %709 = vmatprep.subr.mxu0 0.0
    %710 = vmatpush1.msra.mxu0 0.0
    %711 = vmatprep.subr.mxu0 0.0
    %712 = vmatpush1.msra.mxu0 0.0
    %713 = vmatprep.subr.mxu0 0.0
    %714 = vmatpush1.msra.mxu0 0.0
    %715 = vmatprep.subr.mxu0 0.0
    %716 = vmatpush1.msra.mxu0 0.0
    %717 = vmatprep.subr.mxu0 0.0
    %718 = vmatpush1.msra.mxu0 0.0
    %719 = vmatprep.subr.mxu0 0.0
    %720 = vmatpush1.msra.mxu0 0.0
    %721 = vmatprep.mubr.f32.mxu0 0.0
    %722 = vmatmul.mubr.f32.gmra.mrb[0].mxu0 %v652
    %v723 = vpop.f32.mrb[0].mxu0
    %v724 = vadd.f32 0.0, %v723
    %v725 = vpop.f32.mrb[0].mxu0
    %726 = vmatprep.mubr.f32.mxu0 0.0
    %727 = vmatmul.mubr.f32.gmra.mrb[0].mxu0 %v655
    %v728 = vpop.f32.mrb[0].mxu0
    %v729 = vadd.f32 0.0, %v728
    %v730 = vpop.f32.mrb[0].mxu0
    %731 = vdwg.mxu0
    %v733 = vsel %vm241, %v437, 0
    %v736 = vsel %vm241, %v442, 0
    %738 = vmatprep.subr.mxu0 0.0
    %739 = vmatpush1.msra.mxu0 %v28
    %740 = vmatprep.subr.mxu0 0.0
    %741 = vmatpush1.msra.mxu0 0.0
    %742 = vmatprep.subr.mxu0 0.0
    %743 = vmatpush1.msra.mxu0 0.0
    %744 = vmatprep.subr.mxu0 0.0
    %745 = vmatpush1.msra.mxu0 0.0
    %746 = vmatprep.subr.mxu0 0.0
    %747 = vmatpush1.msra.mxu0 0.0
    %748 = vmatprep.subr.mxu0 0.0
    %749 = vmatpush1.msra.mxu0 0.0
    %750 = vmatprep.subr.mxu0 0.0
    %751 = vmatpush1.msra.mxu0 0.0
    %752 = vmatprep.subr.mxu0 0.0
    %753 = vmatpush1.msra.mxu0 0.0
    %754 = vmatprep.subr.mxu0 0.0
    %755 = vmatpush1.msra.mxu0 0.0
    %756 = vmatprep.subr.mxu0 0.0
    %757 = vmatpush1.msra.mxu0 0.0
    %758 = vmatprep.subr.mxu0 0.0
    %759 = vmatpush1.msra.mxu0 0.0
    %760 = vmatprep.subr.mxu0 0.0
    %761 = vmatpush1.msra.mxu0 0.0
    %762 = vmatprep.subr.mxu0 0.0
    %763 = vmatpush1.msra.mxu0 0.0
    %764 = vmatprep.subr.mxu0 0.0
    %765 = vmatpush1.msra.mxu0 0.0
    %766 = vmatprep.subr.mxu0 0.0
    %767 = vmatpush1.msra.mxu0 0.0
    %768 = vmatprep.subr.mxu0 0.0
    %769 = vmatpush1.msra.mxu0 0.0
    %770 = vmatprep.subr.mxu0 0.0
    %771 = vmatpush1.msra.mxu0 0.0
    %772 = vmatprep.subr.mxu0 0.0
    %773 = vmatpush1.msra.mxu0 0.0
    %774 = vmatprep.subr.mxu0 0.0
    %775 = vmatpush1.msra.mxu0 0.0
    %776 = vmatprep.subr.mxu0 0.0
    %777 = vmatpush1.msra.mxu0 0.0
    %778 = vmatprep.subr.mxu0 0.0
    %779 = vmatpush1.msra.mxu0 0.0
    %780 = vmatprep.subr.mxu0 0.0
    %781 = vmatpush1.msra.mxu0 0.0
    %782 = vmatprep.subr.mxu0 0.0
    %783 = vmatpush1.msra.mxu0 0.0
    %784 = vmatprep.subr.mxu0 0.0
    %785 = vmatpush1.msra.mxu0 0.0
    %786 = vmatprep.subr.mxu0 0.0
    %787 = vmatpush1.msra.mxu0 0.0
    %788 = vmatprep.subr.mxu0 0.0
    %789 = vmatpush1.msra.mxu0 0.0
    %790 = vmatprep.subr.mxu0 0.0
    %791 = vmatpush1.msra.mxu0 0.0
    %792 = vmatprep.subr.mxu0 0.0
    %793 = vmatpush1.msra.mxu0 0.0
    %794 = vmatprep.subr.mxu0 0.0
    %795 = vmatpush1.msra.mxu0 0.0
    %796 = vmatprep.subr.mxu0 0.0
    %797 = vmatpush1.msra.mxu0 0.0
    %798 = vmatprep.subr.mxu0 0.0
    %799 = vmatpush1.msra.mxu0 0.0
    %800 = vmatprep.subr.mxu0 0.0
    %801 = vmatpush1.msra.mxu0 0.0
    %802 = vmatprep.mubr.f32.mxu0 0.0
    %803 = vmatmul.mubr.f32.gmra.mrb[0].mxu0 %v733
    %v804 = vpop.f32.mrb[0].mxu0
    %v805 = vadd.f32 %v724, %v804
    %v806 = vpop.f32.mrb[0].mxu0
    %807 = vmatprep.mubr.f32.mxu0 0.0
    %808 = vmatmul.mubr.f32.gmra.mrb[0].mxu0 %v736
    %v809 = vpop.f32.mrb[0].mxu0
    %v810 = vadd.f32 %v729, %v809
    %v811 = vpop.f32.mrb[0].mxu0
    %812 = vdwg.mxu0
    %813 = vrot.lane.b32.xlu0 %v138, 112
    %v814 = vpop.permute.xlu0 %813
    %815 = vrot.lane.b32.xlu0 %v139, 112
    %v816 = vpop.permute.xlu0 %815
    %817 = vrot.lane.b32.xlu0 %v233, 112
    %v818 = vpop.permute.xlu0 %817
    %819 = vrot.lane.b32.xlu0 %v238, 112
    %v820 = vpop.permute.xlu0 %819
    %v821 = vsel %vm241, %v814, 0
    %v823 = vsel %vm241, %v816, 0
    %v825 = vsel %vm241, %v818, 0
    %v827 = vsel %vm241, %v820, 0
    %829 = vmatprep.subr.mxu0 0.0
    %830 = vmatpush1.xpose.msra.mxu0 %v825
    %831 = vmatprep.subr.mxu0 0.0
    %832 = vmatpush1.xpose.msra.mxu0 %v827
    %833 = vmatprep.subr.mxu0 0.0
    %834 = vmatpush1.xpose.msra.mxu0 0.0
    %835 = vmatprep.subr.mxu0 0.0
    %836 = vmatpush1.xpose.msra.mxu0 0.0
    %837 = vmatprep.subr.mxu0 0.0
    %838 = vmatpush1.xpose.msra.mxu0 0.0
    %839 = vmatprep.subr.mxu0 0.0
    %840 = vmatpush1.xpose.msra.mxu0 0.0
    %841 = vmatprep.subr.mxu0 0.0
    %842 = vmatpush1.xpose.msra.mxu0 0.0
    %843 = vmatprep.subr.mxu0 0.0
    %844 = vmatpush1.xpose.msra.mxu0 0.0
    %845 = vmatprep.subr.mxu0 0.0
    %846 = vmatpush1.xpose.msra.mxu0 0.0
    %847 = vmatprep.subr.mxu0 0.0
    %848 = vmatpush1.xpose.msra.mxu0 0.0
    %849 = vmatprep.subr.mxu0 0.0
    %850 = vmatpush1.xpose.msra.mxu0 0.0
    %851 = vmatprep.subr.mxu0 0.0
    %852 = vmatpush1.xpose.msra.mxu0 0.0
    %853 = vmatprep.subr.mxu0 0.0
    %854 = vmatpush1.xpose.msra.mxu0 0.0
    %855 = vmatprep.subr.mxu0 0.0
    %856 = vmatpush1.xpose.msra.mxu0 0.0
    %857 = vmatprep.subr.mxu0 0.0
    %858 = vmatpush1.xpose.msra.mxu0 0.0
    %859 = vmatprep.subr.mxu0 0.0
    %860 = vmatpush1.xpose.msra.mxu0 0.0
    %861 = vmatprep.subr.mxu0 0.0
    %862 = vmatpush1.xpose.msra.mxu0 0.0
    %863 = vmatprep.subr.mxu0 0.0
    %864 = vmatpush1.xpose.msra.mxu0 0.0
    %865 = vmatprep.subr.mxu0 0.0
    %866 = vmatpush1.xpose.msra.mxu0 0.0
    %867 = vmatprep.subr.mxu0 0.0
    %868 = vmatpush1.xpose.msra.mxu0 0.0
    %869 = vmatprep.subr.mxu0 0.0
    %870 = vmatpush1.xpose.msra.mxu0 0.0
    %871 = vmatprep.subr.mxu0 0.0
    %872 = vmatpush1.xpose.msra.mxu0 0.0
    %873 = vmatprep.subr.mxu0 0.0
    %874 = vmatpush1.xpose.msra.mxu0 0.0
    %875 = vmatprep.subr.mxu0 0.0
    %876 = vmatpush1.xpose.msra.mxu0 0.0
    %877 = vmatprep.subr.mxu0 0.0
    %878 = vmatpush1.xpose.msra.mxu0 0.0
    %879 = vmatprep.subr.mxu0 0.0
    %880 = vmatpush1.xpose.msra.mxu0 0.0
    %881 = vmatprep.subr.mxu0 0.0
    %882 = vmatpush1.xpose.msra.mxu0 0.0
    %883 = vmatprep.subr.mxu0 0.0
    %884 = vmatpush1.xpose.msra.mxu0 0.0
    %885 = vmatprep.subr.mxu0 0.0
    %886 = vmatpush1.xpose.msra.mxu0 0.0
    %887 = vmatprep.subr.mxu0 0.0
    %888 = vmatpush1.xpose.msra.mxu0 0.0
    %889 = vmatprep.subr.mxu0 0.0
    %890 = vmatpush1.xpose.msra.mxu0 0.0
    %891 = vmatprep.subr.mxu0 0.0
    %892 = vmatpush1.xpose.msra.mxu0 0.0
    %893 = vmatprep.mubr.f32.mxu0 0.0
    %894 = vmatmul.mubr.f32.gmra.mrb[0].mxu0 %v821
    %v895 = vpop.f32.mrb[0].mxu0
    %v896 = vadd.f32 %v22, %v895
    %v897 = vpop.f32.mrb[0].mxu0
    %898 = vmatprep.mubr.f32.mxu0 0.0
    %899 = vmatmul.mubr.f32.gmra.mrb[0].mxu0 %v823
    %v900 = vpop.f32.mrb[0].mxu0
    %v901 = vadd.f32 %v23, %v900
    %v902 = vpop.f32.mrb[0].mxu0
    %903 = vdwg.mxu0
    %v904 = vsel %vm329, %v896, -inf
    %905 = vmax.xlane.f32.xlu0 %v904
    %v906 = vpop.xlane.xlu0 %905
    %v907 = vsel %vm329, %v901, -inf
    %908 = vmax.xlane.f32.xlu0 %v907
    %v909 = vpop.xlane.xlu0 %908
    %v910 = vsub.f32 %v896, %v906
    %v911 = vsub.f32 %v901, %v909
    %v912 = vmul.f32 %v910, 1.442695
    %v913 = vpow.pop %v912
    %v914 = vmul.f32 %v911, 1.442695
    %v915 = vpow.pop %v914
    %v916 = vsel %vm329, %v913, 0.0
    %917 = vadd.xlane.f32.xlu0 %v916
    %v918 = vpop.xlane.xlu0 %917
    %v919 = vsel %vm329, %v915, 0.0
    %920 = vadd.xlane.f32.xlu0 %v919
    %v921 = vpop.xlane.xlu0 %920
    %v922 = vrcp.pop %v918
    %v923 = vrcp.pop %v921
    %v924 = vmul.f32 %v918, %v922
    %v925 = vmul.f32 %v921, %v923
    %v926 = vsub.f32 2.0, %v924
    %v927 = vsub.f32 2.0, %v925
    %v928 = vmul.f32 %v922, %v926
    %v929 = vmul.f32 %v923, %v927
    %v930 = vmul.f32 %v913, %v928
    %v931 = vmul.f32 %v915, %v929
    %932 = vrot.lane.b32.xlu0 %v233, 80
    %v933 = vpop.permute.xlu0 %932
    %934 = vrot.lane.b32.xlu0 %v238, 80
    %v935 = vpop.permute.xlu0 %934
    %v939 = vsel %vm329, %v930, 0
    %v942 = vsel %vm329, %v931, 0
    %944 = vmatprep.subr.mxu0 0.0
    %945 = vmatpush1.msra.mxu0 %v933
    %946 = vmatprep.subr.mxu0 0.0
    %947 = vmatpush1.msra.mxu0 %v935
    %948 = vmatprep.subr.mxu0 0.0
    %949 = vmatpush1.msra.mxu0 0.0
    %950 = vmatprep.subr.mxu0 0.0
    %951 = vmatpush1.msra.mxu0 0.0
    %952 = vmatprep.subr.mxu0 0.0
    %953 = vmatpush1.msra.mxu0 0.0
    %954 = vmatprep.subr.mxu0 0.0
    %955 = vmatpush1.msra.mxu0 0.0
    %956 = vmatprep.subr.mxu0 0.0
    %957 = vmatpush1.msra.mxu0 0.0
    %958 = vmatprep.subr.mxu0 0.0
    %959 = vmatpush1.msra.mxu0 0.0
    %960 = vmatprep.subr.mxu0 0.0
    %961 = vmatpush1.msra.mxu0 0.0
    %962 = vmatprep.subr.mxu0 0.0
    %963 = vmatpush1.msra.mxu0 0.0
    %964 = vmatprep.subr.mxu0 0.0
    %965 = vmatpush1.msra.mxu0 0.0
    %966 = vmatprep.subr.mxu0 0.0
    %967 = vmatpush1.msra.mxu0 0.0
    %968 = vmatprep.subr.mxu0 0.0
    %969 = vmatpush1.msra.mxu0 0.0
    %970 = vmatprep.subr.mxu0 0.0
    %971 = vmatpush1.msra.mxu0 0.0
    %972 = vmatprep.subr.mxu0 0.0
    %973 = vmatpush1.msra.mxu0 0.0
    %974 = vmatprep.subr.mxu0 0.0
    %975 = vmatpush1.msra.mxu0 0.0
    %976 = vmatprep.subr.mxu0 0.0
    %977 = vmatpush1.msra.mxu0 0.0
    %978 = vmatprep.subr.mxu0 0.0
    %979 = vmatpush1.msra.mxu0 0.0
    %980 = vmatprep.subr.mxu0 0.0
    %981 = vmatpush1.msra.mxu0 0.0
    %982 = vmatprep.subr.mxu0 0.0
    %983 = vmatpush1.msra.mxu0 0.0
    %984 = vmatprep.subr.mxu0 0.0
    %985 = vmatpush1.msra.mxu0 0.0
    %986 = vmatprep.subr.mxu0 0.0
    %987 = vmatpush1.msra.mxu0 0.0
    %988 = vmatprep.subr.mxu0 0.0
    %989 = vmatpush1.msra.mxu0 0.0
    %990 = vmatprep.subr.mxu0 0.0
    %991 = vmatpush1.msra.mxu0 0.0
    %992 = vmatprep.subr.mxu0 0.0
    %993 = vmatpush1.msra.mxu0 0.0
    %994 = vmatprep.subr.mxu0 0.0
    %995 = vmatpush1.msra.mxu0 0.0
    %996 = vmatprep.subr.mxu0 0.0
    %997 = vmatpush1.msra.mxu0 0.0
    %998 = vmatprep.subr.mxu0 0.0
    %999 = vmatpush1.msra.mxu0 0.0
    %1000 = vmatprep.subr.mxu0 0.0
    %1001 = vmatpush1.msra.mxu0 0.0
    %1002 = vmatprep.subr.mxu0 0.0
    %1003 = vmatpush1.msra.mxu0 0.0
    %1004 = vmatprep.subr.mxu0 0.0
    %1005 = vmatpush1.msra.mxu0 0.0
    %1006 = vmatprep.subr.mxu0 0.0
    %1007 = vmatpush1.msra.mxu0 0.0
    %1008 = vmatprep.mubr.f32.mxu0 0.0
    %1009 = vmatmul.mubr.f32.gmra.mrb[0].mxu0 %v939
    %v1010 = vpop.f32.mrb[0].mxu0
    %v1011 = vadd.f32 0.0, %v1010
    %v1012 = vpop.f32.mrb[0].mxu0
    %1013 = vmatprep.mubr.f32.mxu0 0.0
    %1014 = vmatmul.mubr.f32.gmra.mrb[0].mxu0 %v942
    %v1015 = vpop.f32.mrb[0].mxu0
    %v1016 = vadd.f32 0.0, %v1015
    %v1017 = vpop.f32.mrb[0].mxu0
    %1018 = vdwg.mxu0
    %v1020 = vsel %vm241, %v1011, 0
    %v1023 = vsel %vm241, %v1016, 0
    %1025 = vmatprep.subr.mxu0 0.0
    %1026 = vmatpush1.msra.mxu0 %v30
    %1027 = vmatprep.subr.mxu0 0.0
    %1028 = vmatpush1.msra.mxu0 0.0
    %1029 = vmatprep.subr.mxu0 0.0
    %1030 = vmatpush1.msra.mxu0 0.0
    %1031 = vmatprep.subr.mxu0 0.0
    %1032 = vmatpush1.msra.mxu0 0.0
    %1033 = vmatprep.subr.mxu0 0.0
    %1034 = vmatpush1.msra.mxu0 0.0
    %1035 = vmatprep.subr.mxu0 0.0
    %1036 = vmatpush1.msra.mxu0 0.0
    %1037 = vmatprep.subr.mxu0 0.0
    %1038 = vmatpush1.msra.mxu0 0.0
    %1039 = vmatprep.subr.mxu0 0.0
    %1040 = vmatpush1.msra.mxu0 0.0
    %1041 = vmatprep.subr.mxu0 0.0
    %1042 = vmatpush1.msra.mxu0 0.0
    %1043 = vmatprep.subr.mxu0 0.0
    %1044 = vmatpush1.msra.mxu0 0.0
    %1045 = vmatprep.subr.mxu0 0.0
    %1046 = vmatpush1.msra.mxu0 0.0
    %1047 = vmatprep.subr.mxu0 0.0
    %1048 = vmatpush1.msra.mxu0 0.0
    %1049 = vmatprep.subr.mxu0 0.0
    %1050 = vmatpush1.msra.mxu0 0.0
    %1051 = vmatprep.subr.mxu0 0.0
    %1052 = vmatpush1.msra.mxu0 0.0
    %1053 = vmatprep.subr.mxu0 0.0
    %1054 = vmatpush1.msra.mxu0 0.0
    %1055 = vmatprep.subr.mxu0 0.0
    %1056 = vmatpush1.msra.mxu0 0.0
    %1057 = vmatprep.subr.mxu0 0.0
    %1058 = vmatpush1.msra.mxu0 0.0
    %1059 = vmatprep.subr.mxu0 0.0
    %1060 = vmatpush1.msra.mxu0 0.0
    %1061 = vmatprep.subr.mxu0 0.0
    %1062 = vmatpush1.msra.mxu0 0.0
    %1063 = vmatprep.subr.mxu0 0.0
    %1064 = vmatpush1.msra.mxu0 0.0
    %1065 = vmatprep.subr.mxu0 0.0
    %1066 = vmatpush1.msra.mxu0 0.0
    %1067 = vmatprep.subr.mxu0 0.0
    %1068 = vmatpush1.msra.mxu0 0.0
    %1069 = vmatprep.subr.mxu0 0.0
    %1070 = vmatpush1.msra.mxu0 0.0
    %1071 = vmatprep.subr.mxu0 0.0
    %1072 = vmatpush1.msra.mxu0 0.0
    %1073 = vmatprep.subr.mxu0 0.0
    %1074 = vmatpush1.msra.mxu0 0.0
    %1075 = vmatprep.subr.mxu0 0.0
    %1076 = vmatpush1.msra.mxu0 0.0
    %1077 = vmatprep.subr.mxu0 0.0
    %1078 = vmatpush1.msra.mxu0 0.0
    %1079 = vmatprep.subr.mxu0 0.0
    %1080 = vmatpush1.msra.mxu0 0.0
    %1081 = vmatprep.subr.mxu0 0.0
    %1082 = vmatpush1.msra.mxu0 0.0
    %1083 = vmatprep.subr.mxu0 0.0
    %1084 = vmatpush1.msra.mxu0 0.0
    %1085 = vmatprep.subr.mxu0 0.0
    %1086 = vmatpush1.msra.mxu0 0.0
    %1087 = vmatprep.subr.mxu0 0.0
    %1088 = vmatpush1.msra.mxu0 0.0
    %1089 = vmatprep.mubr.f32.mxu0 0.0
    %1090 = vmatmul.mubr.f32.gmra.mrb[0].mxu0 %v1020
    %v1091 = vpop.f32.mrb[0].mxu0
    %v1092 = vadd.f32 0.0, %v1091
    %v1093 = vpop.f32.mrb[0].mxu0
    %1094 = vmatprep.mubr.f32.mxu0 0.0
    %1095 = vmatmul.mubr.f32.gmra.mrb[0].mxu0 %v1023
    %v1096 = vpop.f32.mrb[0].mxu0
    %v1097 = vadd.f32 0.0, %v1096
    %v1098 = vpop.f32.mrb[0].mxu0
    %1099 = vdwg.mxu0
    %v1100 = vadd.f32 %v805, %v1092
    %v1101 = vadd.f32 %v810, %v1097
    %1102 = vrot.lane.b32.xlu0 %v138, 104
    %v1103 = vpop.permute.xlu0 %1102
    %1104 = vrot.lane.b32.xlu0 %v139, 104
    %v1105 = vpop.permute.xlu0 %1104
    %1106 = vrot.lane.b32.xlu0 %v233, 104
    %v1107 = vpop.permute.xlu0 %1106
    %1108 = vrot.lane.b32.xlu0 %v238, 104
    %v1109 = vpop.permute.xlu0 %1108
    %v1110 = vsel %vm241, %v1103, 0
    %v1112 = vsel %vm241, %v1105, 0
    %v1114 = vsel %vm241, %v1107, 0
    %v1116 = vsel %vm241, %v1109, 0
    %1118 = vmatprep.subr.mxu0 0.0
    %1119 = vmatpush1.xpose.msra.mxu0 %v1114
    %1120 = vmatprep.subr.mxu0 0.0
    %1121 = vmatpush1.xpose.msra.mxu0 %v1116
    %1122 = vmatprep.subr.mxu0 0.0
    %1123 = vmatpush1.xpose.msra.mxu0 0.0
    %1124 = vmatprep.subr.mxu0 0.0
    %1125 = vmatpush1.xpose.msra.mxu0 0.0
    %1126 = vmatprep.subr.mxu0 0.0
    %1127 = vmatpush1.xpose.msra.mxu0 0.0
    %1128 = vmatprep.subr.mxu0 0.0
    %1129 = vmatpush1.xpose.msra.mxu0 0.0
    %1130 = vmatprep.subr.mxu0 0.0
    %1131 = vmatpush1.xpose.msra.mxu0 0.0
    %1132 = vmatprep.subr.mxu0 0.0
    %1133 = vmatpush1.xpose.msra.mxu0 0.0
    %1134 = vmatprep.subr.mxu0 0.0
    %1135 = vmatpush1.xpose.msra.mxu0 0.0
    %1136 = vmatprep.subr.mxu0 0.0
    %1137 = vmatpush1.xpose.msra.mxu0 0.0
    %1138 = vmatprep.subr.mxu0 0.0
    %1139 = vmatpush1.xpose.msra.mxu0 0.0
    %1140 = vmatprep.subr.mxu0 0.0
    %1141 = vmatpush1.xpose.msra.mxu0 0.0
    %1142 = vmatprep.subr.mxu0 0.0
    %1143 = vmatpush1.xpose.msra.mxu0 0.0
    %1144 = vmatprep.subr.mxu0 0.0
    %1145 = vmatpush1.xpose.msra.mxu0 0.0
    %1146 = vmatprep.subr.mxu0 0.0
    %1147 = vmatpush1.xpose.msra.mxu0 0.0
    %1148 = vmatprep.subr.mxu0 0.0
    %1149 = vmatpush1.xpose.msra.mxu0 0.0
    %1150 = vmatprep.subr.mxu0 0.0
    %1151 = vmatpush1.xpose.msra.mxu0 0.0
    %1152 = vmatprep.subr.mxu0 0.0
    %1153 = vmatpush1.xpose.msra.mxu0 0.0
    %1154 = vmatprep.subr.mxu0 0.0
    %1155 = vmatpush1.xpose.msra.mxu0 0.0
    %1156 = vmatprep.subr.mxu0 0.0
    %1157 = vmatpush1.xpose.msra.mxu0 0.0
    %1158 = vmatprep.subr.mxu0 0.0
    %1159 = vmatpush1.xpose.msra.mxu0 0.0
    %1160 = vmatprep.subr.mxu0 0.0
    %1161 = vmatpush1.xpose.msra.mxu0 0.0
    %1162 = vmatprep.subr.mxu0 0.0
    %1163 = vmatpush1.xpose.msra.mxu0 0.0
    %1164 = vmatprep.subr.mxu0 0.0
    %1165 = vmatpush1.xpose.msra.mxu0 0.0
    %1166 = vmatprep.subr.mxu0 0.0
    %1167 = vmatpush1.xpose.msra.mxu0 0.0
    %1168 = vmatprep.subr.mxu0 0.0
    %1169 = vmatpush1.xpose.msra.mxu0 0.0
    %1170 = vmatprep.subr.mxu0 0.0
    %1171 = vmatpush1.xpose.msra.mxu0 0.0
    %1172 = vmatprep.subr.mxu0 0.0
    %1173 = vmatpush1.xpose.msra.mxu0 0.0
    %1174 = vmatprep.subr.mxu0 0.0
    %1175 = vmatpush1.xpose.msra.mxu0 0.0
    %1176 = vmatprep.subr.mxu0 0.0
    %1177 = vmatpush1.xpose.msra.mxu0 0.0
    %1178 = vmatprep.subr.mxu0 0.0
    %1179 = vmatpush1.xpose.msra.mxu0 0.0
    %1180 = vmatprep.subr.mxu0 0.0
    %1181 = vmatpush1.xpose.msra.mxu0 0.0
    %1182 = vmatprep.mubr.f32.mxu0 0.0
    %1183 = vmatmul.mubr.f32.gmra.mrb[0].mxu0 %v1110
    %v1184 = vpop.f32.mrb[0].mxu0
    %v1185 = vadd.f32 %v22, %v1184
    %v1186 = vpop.f32.mrb[0].mxu0
    %1187 = vmatprep.mubr.f32.mxu0 0.0
    %1188 = vmatmul.mubr.f32.gmra.mrb[0].mxu0 %v1112
    %v1189 = vpop.f32.mrb[0].mxu0
    %v1190 = vadd.f32 %v23, %v1189
    %v1191 = vpop.f32.mrb[0].mxu0
    %1192 = vdwg.mxu0
    %v1193 = vsel %vm329, %v1185, -inf
    %1194 = vmax.xlane.f32.xlu0 %v1193
    %v1195 = vpop.xlane.xlu0 %1194
    %v1196 = vsel %vm329, %v1190, -inf
    %1197 = vmax.xlane.f32.xlu0 %v1196
    %v1198 = vpop.xlane.xlu0 %1197
    %v1199 = vsub.f32 %v1185, %v1195
    %v1200 = vsub.f32 %v1190, %v1198
    %v1201 = vmul.f32 %v1199, 1.442695
    %v1202 = vpow.pop %v1201
    %v1203 = vmul.f32 %v1200, 1.442695
    %v1204 = vpow.pop %v1203
    %v1205 = vsel %vm329, %v1202, 0.0
    %1206 = vadd.xlane.f32.xlu0 %v1205
    %v1207 = vpop.xlane.xlu0 %1206
    %v1208 = vsel %vm329, %v1204, 0.0
    %1209 = vadd.xlane.f32.xlu0 %v1208
    %v1210 = vpop.xlane.xlu0 %1209
    %v1211 = vrcp.pop %v1207
    %v1212 = vrcp.pop %v1210
    %v1213 = vmul.f32 %v1207, %v1211
    %v1214 = vmul.f32 %v1210, %v1212
    %v1215 = vsub.f32 2.0, %v1213
    %v1216 = vsub.f32 2.0, %v1214
    %v1217 = vmul.f32 %v1211, %v1215
    %v1218 = vmul.f32 %v1212, %v1216
    %v1219 = vmul.f32 %v1202, %v1217
    %v1220 = vmul.f32 %v1204, %v1218
    %1221 = vrot.lane.b32.xlu0 %v233, 72
    %v1222 = vpop.permute.xlu0 %1221
    %1223 = vrot.lane.b32.xlu0 %v238, 72
    %v1224 = vpop.permute.xlu0 %1223
    %v1228 = vsel %vm329, %v1219, 0
    %v1231 = vsel %vm329, %v1220, 0
    %1233 = vmatprep.subr.mxu0 0.0
    %1234 = vmatpush1.msra.mxu0 %v1222
    %1235 = vmatprep.subr.mxu0 0.0
    %1236 = vmatpush1.msra.mxu0 %v1224
    %1237 = vmatprep.subr.mxu0 0.0
    %1238 = vmatpush1.msra.mxu0 0.0
    %1239 = vmatprep.subr.mxu0 0.0
    %1240 = vmatpush1.msra.mxu0 0.0
    %1241 = vmatprep.subr.mxu0 0.0
    %1242 = vmatpush1.msra.mxu0 0.0
    %1243 = vmatprep.subr.mxu0 0.0
    %1244 = vmatpush1.msra.mxu0 0.0
    %1245 = vmatprep.subr.mxu0 0.0
    %1246 = vmatpush1.msra.mxu0 0.0
    %1247 = vmatprep.subr.mxu0 0.0
    %1248 = vmatpush1.msra.mxu0 0.0
    %1249 = vmatprep.subr.mxu0 0.0
    %1250 = vmatpush1.msra.mxu0 0.0
    %1251 = vmatprep.subr.mxu0 0.0
    %1252 = vmatpush1.msra.mxu0 0.0
    %1253 = vmatprep.subr.mxu0 0.0
    %1254 = vmatpush1.msra.mxu0 0.0
    %1255 = vmatprep.subr.mxu0 0.0
    %1256 = vmatpush1.msra.mxu0 0.0
    %1257 = vmatprep.subr.mxu0 0.0
    %1258 = vmatpush1.msra.mxu0 0.0
    %1259 = vmatprep.subr.mxu0 0.0
    %1260 = vmatpush1.msra.mxu0 0.0
    %1261 = vmatprep.subr.mxu0 0.0
    %1262 = vmatpush1.msra.mxu0 0.0
    %1263 = vmatprep.subr.mxu0 0.0
    %1264 = vmatpush1.msra.mxu0 0.0
    %1265 = vmatprep.subr.mxu0 0.0
    %1266 = vmatpush1.msra.mxu0 0.0
    %1267 = vmatprep.subr.mxu0 0.0
    %1268 = vmatpush1.msra.mxu0 0.0
    %1269 = vmatprep.subr.mxu0 0.0
    %1270 = vmatpush1.msra.mxu0 0.0
    %1271 = vmatprep.subr.mxu0 0.0
    %1272 = vmatpush1.msra.mxu0 0.0
    %1273 = vmatprep.subr.mxu0 0.0
    %1274 = vmatpush1.msra.mxu0 0.0
    %1275 = vmatprep.subr.mxu0 0.0
    %1276 = vmatpush1.msra.mxu0 0.0
    %1277 = vmatprep.subr.mxu0 0.0
    %1278 = vmatpush1.msra.mxu0 0.0
    %1279 = vmatprep.subr.mxu0 0.0
    %1280 = vmatpush1.msra.mxu0 0.0
    %1281 = vmatprep.subr.mxu0 0.0
    %1282 = vmatpush1.msra.mxu0 0.0
    %1283 = vmatprep.subr.mxu0 0.0
    %1284 = vmatpush1.msra.mxu0 0.0
    %1285 = vmatprep.subr.mxu0 0.0
    %1286 = vmatpush1.msra.mxu0 0.0
    %1287 = vmatprep.subr.mxu0 0.0
    %1288 = vmatpush1.msra.mxu0 0.0
    %1289 = vmatprep.subr.mxu0 0.0
    %1290 = vmatpush1.msra.mxu0 0.0
    %1291 = vmatprep.subr.mxu0 0.0
    %1292 = vmatpush1.msra.mxu0 0.0
    %1293 = vmatprep.subr.mxu0 0.0
    %1294 = vmatpush1.msra.mxu0 0.0
    %1295 = vmatprep.subr.mxu0 0.0
    %1296 = vmatpush1.msra.mxu0 0.0
    %1297 = vmatprep.mubr.f32.mxu0 0.0
    %1298 = vmatmul.mubr.f32.gmra.mrb[0].mxu0 %v1228
    %v1299 = vpop.f32.mrb[0].mxu0
    %v1300 = vadd.f32 0.0, %v1299
    %v1301 = vpop.f32.mrb[0].mxu0
    %1302 = vmatprep.mubr.f32.mxu0 0.0
    %1303 = vmatmul.mubr.f32.gmra.mrb[0].mxu0 %v1231
    %v1304 = vpop.f32.mrb[0].mxu0
    %v1305 = vadd.f32 0.0, %v1304
    %v1306 = vpop.f32.mrb[0].mxu0
    %1307 = vdwg.mxu0
    %v1309 = vsel %vm241, %v1300, 0
    %v1312 = vsel %vm241, %v1305, 0
    %1314 = vmatprep.subr.mxu0 0.0
    %1315 = vmatpush1.msra.mxu0 %v31
    %1316 = vmatprep.subr.mxu0 0.0
    %1317 = vmatpush1.msra.mxu0 0.0
    %1318 = vmatprep.subr.mxu0 0.0
    %1319 = vmatpush1.msra.mxu0 0.0
    %1320 = vmatprep.subr.mxu0 0.0
    %1321 = vmatpush1.msra.mxu0 0.0
    %1322 = vmatprep.subr.mxu0 0.0
    %1323 = vmatpush1.msra.mxu0 0.0
    %1324 = vmatprep.subr.mxu0 0.0
    %1325 = vmatpush1.msra.mxu0 0.0
    %1326 = vmatprep.subr.mxu0 0.0
    %1327 = vmatpush1.msra.mxu0 0.0
    %1328 = vmatprep.subr.mxu0 0.0
    %1329 = vmatpush1.msra.mxu0 0.0
    %1330 = vmatprep.subr.mxu0 0.0
    %1331 = vmatpush1.msra.mxu0 0.0
    %1332 = vmatprep.subr.mxu0 0.0
    %1333 = vmatpush1.msra.mxu0 0.0
    %1334 = vmatprep.subr.mxu0 0.0
    %1335 = vmatpush1.msra.mxu0 0.0
    %1336 = vmatprep.subr.mxu0 0.0
    %1337 = vmatpush1.msra.mxu0 0.0
    %1338 = vmatprep.subr.mxu0 0.0
    %1339 = vmatpush1.msra.mxu0 0.0
    %1340 = vmatprep.subr.mxu0 0.0
    %1341 = vmatpush1.msra.mxu0 0.0
    %1342 = vmatprep.subr.mxu0 0.0
    %1343 = vmatpush1.msra.mxu0 0.0
    %1344 = vmatprep.subr.mxu0 0.0
    %1345 = vmatpush1.msra.mxu0 0.0
    %1346 = vmatprep.subr.mxu0 0.0
    %1347 = vmatpush1.msra.mxu0 0.0
    %1348 = vmatprep.subr.mxu0 0.0
    %1349 = vmatpush1.msra.mxu0 0.0
    %1350 = vmatprep.subr.mxu0 0.0
    %1351 = vmatpush1.msra.mxu0 0.0
    %1352 = vmatprep.subr.mxu0 0.0
    %1353 = vmatpush1.msra.mxu0 0.0
    %1354 = vmatprep.subr.mxu0 0.0
    %1355 = vmatpush1.msra.mxu0 0.0
    %1356 = vmatprep.subr.mxu0 0.0
    %1357 = vmatpush1.msra.mxu0 0.0
    %1358 = vmatprep.subr.mxu0 0.0
    %1359 = vmatpush1.msra.mxu0 0.0
    %1360 = vmatprep.subr.mxu0 0.0
    %1361 = vmatpush1.msra.mxu0 0.0
    %1362 = vmatprep.subr.mxu0 0.0
    %1363 = vmatpush1.msra.mxu0 0.0
    %1364 = vmatprep.subr.mxu0 0.0
    %1365 = vmatpush1.msra.mxu0 0.0
    %1366 = vmatprep.subr.mxu0 0.0
    %1367 = vmatpush1.msra.mxu0 0.0
    %1368 = vmatprep.subr.mxu0 0.0
    %1369 = vmatpush1.msra.mxu0 0.0
    %1370 = vmatprep.subr.mxu0 0.0
    %1371 = vmatpush1.msra.mxu0 0.0
    %1372 = vmatprep.subr.mxu0 0.0
    %1373 = vmatpush1.msra.mxu0 0.0
    %1374 = vmatprep.subr.mxu0 0.0
    %1375 = vmatpush1.msra.mxu0 0.0
    %1376 = vmatprep.subr.mxu0 0.0
    %1377 = vmatpush1.msra.mxu0 0.0
    %1378 = vmatprep.mubr.f32.mxu0 0.0
    %1379 = vmatmul.mubr.f32.gmra.mrb[0].mxu0 %v1309
    %v1380 = vpop.f32.mrb[0].mxu0
    %v1381 = vadd.f32 0.0, %v1380
    %v1382 = vpop.f32.mrb[0].mxu0
    %1383 = vmatprep.mubr.f32.mxu0 0.0
    %1384 = vmatmul.mubr.f32.gmra.mrb[0].mxu0 %v1312
    %v1385 = vpop.f32.mrb[0].mxu0
    %v1386 = vadd.f32 0.0, %v1385
    %v1387 = vpop.f32.mrb[0].mxu0
    %1388 = vdwg.mxu0
    %v1389 = vadd.f32 %v1100, %v1381
    %v1390 = vadd.f32 %v1101, %v1386
    %v1391 = vlaneseq
    %v1392 = vshrl.u32 %v1391, 7
    %v1393 = vsub.s32 0, %v1392
    %v1394 = vrot.slane %v46, %v1393
    %v1395 = vadd.f32 %v1389, %v1394
    %v1396 = vadd.f32 %v1390, %v1394
    %v1397 = vadd.f32 %v1395, %v18
    %v1398 = vadd.f32 %v1396, %v19
    %v1399 = vsel %vm56, %v1397, 0.0
    %1400 = vadd.xlane.f32.xlu0 %v1399
    %v1401 = vpop.xlane.xlu0 %1400
    %v1402 = vsel %vm56, %v1398, 0.0
    %1403 = vadd.xlane.f32.xlu0 %v1402
    %v1404 = vpop.xlane.xlu0 %1403
    %v1405 = vrcp.pop 32.0
    %v1406 = vmul.f32 %v1401, %v1405
    %v1407 = vmul.f32 %v1404, %v1405
    %v1408 = vsub.f32 %v1397, %v1406
    %v1409 = vsub.f32 %v1398, %v1407
    %v1410 = vmul.f32 %v1408, %v1408
    %v1411 = vmul.f32 %v1409, %v1409
    %v1412 = vsel %vm56, %v1410, 0.0
    %1413 = vadd.xlane.f32.xlu0 %v1412
    %v1414 = vpop.xlane.xlu0 %1413
    %v1415 = vsel %vm56, %v1411, 0.0
    %1416 = vadd.xlane.f32.xlu0 %v1415
    %v1417 = vpop.xlane.xlu0 %1416
    %v1418 = vmul.f32 %v1414, %v1405
    %v1419 = vmul.f32 %v1417, %v1405
    %v1420 = vadd.f32 %v1418, 1e-12
    %v1421 = vadd.f32 %v1419, 1e-12
    %v1422 = vrsqrt.pop %v1420
    %v1423 = vrsqrt.pop %v1421
    %v1424 = vmul.f32 %v1408, %v1422
    %v1425 = vmul.f32 %v1409, %v1423
    %v1426 = vlaneseq
    %v1427 = vshrl.u32 %v1426, 7
    %v1428 = vsub.s32 0, %v1427
    %v1429 = vrot.slane %v47, %v1428
    %v1430 = vmul.f32 %v1424, %v1429
    %v1431 = vmul.f32 %v1425, %v1429
    %v1432 = vlaneseq
    %v1433 = vshrl.u32 %v1432, 7
    %v1434 = vsub.s32 0, %v1433
    %v1435 = vrot.slane %v48, %v1434
    %v1436 = vadd.f32 %v1430, %v1435
    %v1437 = vadd.f32 %v1431, %v1435
    %v1438 = vlaneseq
    %v1439 = vshrl.u32 %v1438, 7
    %v1440 = vsub.s32 0, %v1439
    %v1441 = vrot.slane %v45, %v1440
    %v1443 = vsel %vm56, %v1436, 0
    %v1446 = vsel %vm56, %v1437, 0
    %1448 = vmatprep.subr.mxu0 0.0
    %1449 = vmatpush1.msra.mxu0 %v32
    %1450 = vmatprep.subr.mxu0 0.0
    %1451 = vmatpush1.msra.mxu0 %v33
    %1452 = vmatprep.subr.mxu0 0.0
    %1453 = vmatpush1.msra.mxu0 %v34
    %1454 = vmatprep.subr.mxu0 0.0
    %1455 = vmatpush1.msra.mxu0 %v35
    %1456 = vmatprep.subr.mxu0 0.0
    %1457 = vmatpush1.msra.mxu0 0.0
    %1458 = vmatprep.subr.mxu0 0.0
    %1459 = vmatpush1.msra.mxu0 0.0
    %1460 = vmatprep.subr.mxu0 0.0
    %1461 = vmatpush1.msra.mxu0 0.0
    %1462 = vmatprep.subr.mxu0 0.0
    %1463 = vmatpush1.msra.mxu0 0.0
    %1464 = vmatprep.subr.mxu0 0.0
    %1465 = vmatpush1.msra.mxu0 0.0
    %1466 = vmatprep.subr.mxu0 0.0
    %1467 = vmatpush1.msra.mxu0 0.0
    %1468 = vmatprep.subr.mxu0 0.0
    %1469 = vmatpush1.msra.mxu0 0.0
    %1470 = vmatprep.subr.mxu0 0.0
    %1471 = vmatpush1.msra.mxu0 0.0
    %1472 = vmatprep.subr.mxu0 0.0
    %1473 = vmatpush1.msra.mxu0 0.0
    %1474 = vmatprep.subr.mxu0 0.0
    %1475 = vmatpush1.msra.mxu0 0.0
    %1476 = vmatprep.subr.mxu0 0.0
    %1477 = vmatpush1.msra.mxu0 0.0
    %1478 = vmatprep.subr.mxu0 0.0
    %1479 = vmatpush1.msra.mxu0 0.0
    %1480 = vmatprep.subr.mxu0 0.0
    %1481 = vmatpush1.msra.mxu0 0.0
    %1482 = vmatprep.subr.mxu0 0.0
    %1483 = vmatpush1.msra.mxu0 0.0
    %1484 = vmatprep.subr.mxu0 0.0
    %1485 = vmatpush1.msra.mxu0 0.0
    %1486 = vmatprep.subr.mxu0 0.0
    %1487 = vmatpush1.msra.mxu0 0.0
    %1488 = vmatprep.subr.mxu0 0.0
    %1489 = vmatpush1.msra.mxu0 0.0
    %1490 = vmatprep.subr.mxu0 0.0
    %1491 = vmatpush1.msra.mxu0 0.0
    %1492 = vmatprep.subr.mxu0 0.0
    %1493 = vmatpush1.msra.mxu0 0.0
    %1494 = vmatprep.subr.mxu0 0.0
    %1495 = vmatpush1.msra.mxu0 0.0
    %1496 = vmatprep.subr.mxu0 0.0
    %1497 = vmatpush1.msra.mxu0 0.0
    %1498 = vmatprep.subr.mxu0 0.0
    %1499 = vmatpush1.msra.mxu0 0.0
    %1500 = vmatprep.subr.mxu0 0.0
    %1501 = vmatpush1.msra.mxu0 0.0
    %1502 = vmatprep.subr.mxu0 0.0
    %1503 = vmatpush1.msra.mxu0 0.0
    %1504 = vmatprep.subr.mxu0 0.0
    %1505 = vmatpush1.msra.mxu0 0.0
    %1506 = vmatprep.subr.mxu0 0.0
    %1507 = vmatpush1.msra.mxu0 0.0
    %1508 = vmatprep.subr.mxu0 0.0
    %1509 = vmatpush1.msra.mxu0 0.0
    %1510 = vmatprep.subr.mxu0 0.0
    %1511 = vmatpush1.msra.mxu0 0.0
    %1512 = vmatprep.mubr.f32.mxu0 0.0
    %1513 = vmatmul.mubr.f32.gmra.mrb[0].mxu0 %v1443
    %v1514 = vpop.f32.mrb[0].mxu0
    %v1515 = vadd.f32 %v1441, %v1514
    %v1516 = vpop.f32.mrb[0].mxu0
    %1517 = vmatprep.mubr.f32.mxu0 0.0
    %1518 = vmatmul.mubr.f32.gmra.mrb[0].mxu0 %v1446
    %v1519 = vpop.f32.mrb[0].mxu0
    %v1520 = vadd.f32 %v1441, %v1519
    %v1521 = vpop.f32.mrb[0].mxu0
    %1522 = vdwg.mxu0
    %v1523 = vmul.f32 %v1515, 0.5
    %v1524 = vmul.f32 %v1520, 0.5
    %v1525 = vmul.f32 %v1515, 0.70710677
    %v1526 = vmul.f32 %v1520, 0.70710677
    %v1527 = verf.f32.pop %v1525
    %v1528 = verf.f32.pop %v1526
    %v1529 = vadd.f32 %v1527, 1.0
    %v1530 = vadd.f32 %v1528, 1.0
    %v1531 = vmul.f32 %v1523, %v1529
    %v1532 = vmul.f32 %v1524, %v1530
    %v1533 = vlaneseq
    %v1534 = vshrl.u32 %v1533, 7
    %v1535 = vsub.s32 0, %v1534
    %v1536 = vrot.slane %v49, %v1535
    %vm1537 = vcmask 523264
    %v1539 = vsel %vm1537, %v1531, 0
    %v1542 = vsel %vm1537, %v1532, 0
    %1544 = vmatprep.subr.mxu0 0.0
    %1545 = vmatpush1.msra.mxu0 %v36
    %1546 = vmatprep.subr.mxu0 0.0
    %1547 = vmatpush1.msra.mxu0 %v37
    %1548 = vmatprep.subr.mxu0 0.0
    %1549 = vmatpush1.msra.mxu0 %v38
    %1550 = vmatprep.subr.mxu0 0.0
    %1551 = vmatpush1.msra.mxu0 %v39
    %1552 = vmatprep.subr.mxu0 0.0
    %1553 = vmatpush1.msra.mxu0 %v40
    %1554 = vmatprep.subr.mxu0 0.0
    %1555 = vmatpush1.msra.mxu0 %v41
    %1556 = vmatprep.subr.mxu0 0.0
    %1557 = vmatpush1.msra.mxu0 %v42
    %1558 = vmatprep.subr.mxu0 0.0
    %1559 = vmatpush1.msra.mxu0 %v43
    %1560 = vmatprep.subr.mxu0 0.0
    %1561 = vmatpush1.msra.mxu0 0.0
    %1562 = vmatprep.subr.mxu0 0.0
    %1563 = vmatpush1.msra.mxu0 0.0
    %1564 = vmatprep.subr.mxu0 0.0
    %1565 = vmatpush1.msra.mxu0 0.0
    %1566 = vmatprep.subr.mxu0 0.0
    %1567 = vmatpush1.msra.mxu0 0.0
    %1568 = vmatprep.subr.mxu0 0.0
    %1569 = vmatpush1.msra.mxu0 0.0
    %1570 = vmatprep.subr.mxu0 0.0
    %1571 = vmatpush1.msra.mxu0 0.0
    %1572 = vmatprep.subr.mxu0 0.0
    %1573 = vmatpush1.msra.mxu0 0.0
    %1574 = vmatprep.subr.mxu0 0.0
    %1575 = vmatpush1.msra.mxu0 0.0
    %1576 = vmatprep.subr.mxu0 0.0
    %1577 = vmatpush1.msra.mxu0 0.0
    %1578 = vmatprep.subr.mxu0 0.0
    %1579 = vmatpush1.msra.mxu0 0.0
    %1580 = vmatprep.subr.mxu0 0.0
    %1581 = vmatpush1.msra.mxu0 0.0
    %1582 = vmatprep.subr.mxu0 0.0
    %1583 = vmatpush1.msra.mxu0 0.0
    %1584 = vmatprep.subr.mxu0 0.0
    %1585 = vmatpush1.msra.mxu0 0.0
    %1586 = vmatprep.subr.mxu0 0.0
    %1587 = vmatpush1.msra.mxu0 0.0
    %1588 = vmatprep.subr.mxu0 0.0
    %1589 = vmatpush1.msra.mxu0 0.0
    %1590 = vmatprep.subr.mxu0 0.0
    %1591 = vmatpush1.msra.mxu0 0.0
    %1592 = vmatprep.subr.mxu0 0.0
    %1593 = vmatpush1.msra.mxu0 0.0
    %1594 = vmatprep.subr.mxu0 0.0
    %1595 = vmatpush1.msra.mxu0 0.0
    %1596 = vmatprep.subr.mxu0 0.0
    %1597 = vmatpush1.msra.mxu0 0.0
    %1598 = vmatprep.subr.mxu0 0.0
    %1599 = vmatpush1.msra.mxu0 0.0
    %1600 = vmatprep.subr.mxu0 0.0
    %1601 = vmatpush1.msra.mxu0 0.0
    %1602 = vmatprep.subr.mxu0 0.0
    %1603 = vmatpush1.msra.mxu0 0.0
    %1604 = vmatprep.subr.mxu0 0.0
    %1605 = vmatpush1.msra.mxu0 0.0
    %1606 = vmatprep.subr.mxu0 0.0
    %1607 = vmatpush1.msra.mxu0 0.0
    %1608 = vmatprep.mubr.f32.mxu0 0.0
    %1609 = vmatmul.mubr.f32.gmra.mrb[0].mxu0 %v1539
    %v1610 = vpop.f32.mrb[0].mxu0
    %v1611 = vadd.f32 %v1536, %v1610
    %v1612 = vpop.f32.mrb[0].mxu0
    %1613 = vmatprep.mubr.f32.mxu0 0.0
    %1614 = vmatmul.mubr.f32.gmra.mrb[0].mxu0 %v1542
    %v1615 = vpop.f32.mrb[0].mxu0
    %v1616 = vadd.f32 %v1536, %v1615
    %v1617 = vpop.f32.mrb[0].mxu0
    %1618 = vdwg.mxu0
    %v1619 = vadd.f32 %v1611, %v1436
    %v1620 = vadd.f32 %v1616, %v1437
    %v1621 = vsel %vm56, %v1619, 0.0
    %1622 = vadd.xlane.f32.xlu0 %v1621
    %v1623 = vpop.xlane.xlu0 %1622
    %v1624 = vsel %vm56, %v1620, 0.0
    %1625 = vadd.xlane.f32.xlu0 %v1624
    %v1626 = vpop.xlane.xlu0 %1625
    %v1627 = vmul.f32 %v1623, %v1405
    %v1628 = vmul.f32 %v1626, %v1405
    %v1629 = vsub.f32 %v1619, %v1627
    %v1630 = vsub.f32 %v1620, %v1628
    %v1631 = vmul.f32 %v1629, %v1629
    %v1632 = vmul.f32 %v1630, %v1630
    %v1633 = vsel %vm56, %v1631, 0.0
    %1634 = vadd.xlane.f32.xlu0 %v1633
    %v1635 = vpop.xlane.xlu0 %1634
    %v1636 = vsel %vm56, %v1632, 0.0
    %1637 = vadd.xlane.f32.xlu0 %v1636
    %v1638 = vpop.xlane.xlu0 %1637
    %v1639 = vmul.f32 %v1635, %v1405
    %v1640 = vmul.f32 %v1638, %v1405
    %v1641 = vadd.f32 %v1639, 1e-12
    %v1642 = vadd.f32 %v1640, 1e-12
    %v1643 = vrsqrt.pop %v1641
    %v1644 = vrsqrt.pop %v1642
    %v1645 = vmul.f32 %v1629, %v1643
    %v1646 = vmul.f32 %v1630, %v1644
    %v1647 = vlaneseq
    %v1648 = vshrl.u32 %v1647, 7
    %v1649 = vsub.s32 0, %v1648
    %v1650 = vrot.slane %v50, %v1649
    %v1651 = vmul.f32 %v1645, %v1650
    %v1652 = vmul.f32 %v1646, %v1650
    %v1653 = vlaneseq
    %v1654 = vshrl.u32 %v1653, 7
    %v1655 = vsub.s32 0, %v1654
    %v1656 = vrot.slane %v51, %v1655
    %v1657 = vadd.f32 %v1651, %v1656
    %v1658 = vadd.f32 %v1652, %v1656
    %1659 = vst.msk [vmem:[#allocation2] sm:$0xff] %vm56, %v1657
    %1660 = vst.msk [vmem:[#allocation2 + $0x8] sm:$0xff] %vm56, %v1658
    // Predicated region
    $region18: #{bert_cross_attention_layer.1} parent=1 // pred_check
      _
    $region19: #{bert_cross_attention_layer.1} parent=1 // pred_check_branch
      %1662 = sbr.rel (0) target = $region21
    $region20: #{bert_cross_attention_layer.1} parent=1 // pred_region
      %s1664 = ssub.s32 256, 256
      %1665 = vsyncadd [#allocation3], %s1664
      %s1666 = sshll.u32 [#allocation2], 4
      %s1667 = int_to_ptr.vmem [resolvable:$true] %s1666
      %1672 = dma.vmem_to_hbm [thread:$0]  %s1667, 256, %s4, [#allocation3], 128, 128, 8
    $region21: #{bert_cross_attention_layer.1} parent=1 // pred_fallthru
      _
    // Predicated region
    $region22: #{bert_cross_attention_layer.1} parent=1 // pred_check
      _
    $region23: #{bert_cross_attention_layer.1} parent=1 // pred_check_branch
      %1674 = sbr.rel (0) target = $region25
    $region24: #{bert_cross_attention_layer.1} parent=1 // pred_region
      %1675 = dma.done [#allocation3], 256
    $region25: #{bert_cross_attention_layer.1} parent=1 // pred_fallthru
      _
    %1676 = vsyncpa [#allocation3], 1

</llo_original>
